<compile_context>
chip_gen: v7x
topology: tpu7x:2x2x1
jax: 0.10.0
libtpu: 0.0.40
codegen_flags: <defaults>
</compile_context>

<pallas_src>
import functools

import numpy as np

import jax
import jax.numpy as jnp
from jax.experimental import pallas as pl
from jax.experimental.pallas import tpu as pltpu


# ----------------------------------------------------------------------------
# In-kernel helper
# ----------------------------------------------------------------------------
def _bn_train(y, gamma, beta, eps):
    """Training-mode BatchNorm over axis 0 (every row is a valid sample/position)."""
    inv = 1.0 / y.shape[0]
    mu = jnp.sum(y, axis=0, keepdims=True) * inv
    d = y - mu
    var = jnp.sum(d * d, axis=0, keepdims=True) * inv          # biased variance
    scale = gamma * jax.lax.rsqrt(var + eps)
    return y * scale + (beta - mu * scale)


# ----------------------------------------------------------------------------
# The single fused kernel
# Activation layout: rows = n*L + l (batch-major), lanes = channel, except the
# last two layers which keep their K output taps packed along the lanes.
# ----------------------------------------------------------------------------
def _generator_kernel(x_ref, w1_ref, g1_ref, b1_ref,
                      wA_ref, sA_ref, gA_ref, bA_ref,
                      wB_ref, sB_ref, gB_ref, bB_ref,
                      wC_ref, sC_ref, gC_ref, bC_ref,
                      w4_ref, g4_ref, b4_ref,
                      w5_ref, o_ref, *, eps):
    f32, bf16 = jnp.float32, jnp.bfloat16
    c1 = w1_ref.shape[1] // 4                  # dim*8 channels after the (N, C, 4) view

    # ---- l1: Linear -> BatchNorm1d(features) -> ReLU   (rows = batch) --------
    y1 = jnp.dot(x_ref[...].astype(bf16), w1_ref[...], preferred_element_type=f32)
    h1 = jnp.maximum(_bn_train(y1, g1_ref[...], b1_ref[...], eps), 0.0)   # (N, 4*c1)

    # view (N, 4*c1) -> rows = l*N + n, lanes = channel (clean 4-piece concat;
    # the first merged scatter matrix re-orders rows to batch-major for free).
    a = jnp.concatenate([h1[:, l * c1:(l + 1) * c1] for l in range(4)], axis=0)

    # ---- 3x [ConvTranspose1d(k=5, s=2, p=2, op=1) -> BN -> ReLU] -------------
    for w_ref, s_ref, g_ref, b_ref in ((wA_ref, sA_ref, gA_ref, bA_ref),
                                       (wB_ref, sB_ref, gB_ref, bB_ref),
                                       (wC_ref, sC_ref, gC_ref, bC_ref)):
        c_out = w_ref.shape[1] // 5
        # channel mixing: exact (Cin, 5*Cout) weight, one bf16 MXU dot, f32 accum
        z = jnp.dot(a.astype(bf16), w_ref[...], preferred_element_type=f32)
        # overlap-add of the 5 taps: ONE merged 0/1 scatter dot (kept f32-exact);
        # output rows come out batch-major (n*L_out + l_out).
        z_stack = jnp.concatenate(
            [z[:, k * c_out:(k + 1) * c_out] for k in range(5)], axis=0)
        y = jnp.dot(s_ref[...], z_stack, preferred_element_type=f32)
        a = jnp.maximum(_bn_train(y, g_ref[...], b_ref[...], eps), 0.0)

    # ---- ConvTranspose1d(k=3, s=3) -> BN -> ReLU: stride == K -> no overlap;
    #      keep the 3 output taps packed along lanes (col = tap*dim + channel) --
    dim = g4_ref.shape[1]
    z4 = jnp.dot(a.astype(bf16), w4_ref[...], preferred_element_type=f32)   # (N*32, 3*dim)
    inv4 = 1.0 / (z4.shape[0] * 3)                                          # 1 / (N*96)
    cs = jnp.sum(z4, axis=0, keepdims=True)
    mu_c = (cs[:, :dim] + cs[:, dim:2 * dim] + cs[:, 2 * dim:]) * inv4
    mu_f = jnp.concatenate([mu_c, mu_c, mu_c], axis=1)
    d = z4 - mu_f
    ss = jnp.sum(d * d, axis=0, keepdims=True)
    var_c = (ss[:, :dim] + ss[:, dim:2 * dim] + ss[:, 2 * dim:]) * inv4
    scale_c = g4_ref[...] * jax.lax.rsqrt(var_c + eps)
    shift_c = b4_ref[...] - mu_c * scale_c
    scale_f = jnp.concatenate([scale_c, scale_c, scale_c], axis=1)
    shift_f = jnp.concatenate([shift_c, shift_c, shift_c], axis=1)
    a5 = jnp.maximum(z4 * scale_f + shift_f, 0.0)                           # (N*32, 3*dim)

    # ---- ConvTranspose1d(k=7, s=7, Cout=1) -> Tanh: block-diag weight over the
    #      3 packed taps; output columns zero-padded to 128 -> lane-dense store --
    z5 = jnp.dot(a5.astype(bf16), w5_ref[...], preferred_element_type=f32)  # (N*32, 128)
    o_ref[...] = jnp.tanh(z5)


# ----------------------------------------------------------------------------
# One-time weight preparation (hoisted out of the forward pass)
# ----------------------------------------------------------------------------
def _merged_scatter(l_in, n, k, stride, padding, output_padding, in_batch_major):
    """Single (N*Lout, K*N*Lin) 0/1 overlap-add matrix.

    Input  rows (columns of S): kk*N*Lin + (b*Lin + li)  if in_batch_major
                                 kk*N*Lin + (li*n + b)    otherwise
    Output rows: b*Lout + lo   (batch-major).
    """
    l_out = (l_in - 1) * stride - 2 * padding + k + output_padding
    r_in = n * l_in
    s = np.zeros((n * l_out, k * r_in), np.float32)
    for kk in range(k):
        for li in range(l_in):
            lo = li * stride - padding + kk
            if 0 <= lo < l_out:
                for b in range(n):
                    rin = b * l_in + li if in_batch_major else li * n + b
                    s[b * l_out + lo, kk * r_in + rin] = 1.0
    return s


def _prepare_operands(params, in_dim, dim, batch):
    f32, bf16 = jnp.float32, jnp.bfloat16
    c1 = dim * 8

    # l1 weight / BN params permuted to position-major columns (col = l*c1 + c)
    w1t = params["w_l1"].T                                      # (in_dim, 4*c1), col = c*4+l
    w1 = (w1t.reshape(in_dim, c1, 4).transpose(0, 2, 1)
             .reshape(in_dim, 4 * c1).astype(bf16))
    g1 = params["bn1_g"].reshape(c1, 4).T.reshape(1, 4 * c1).astype(f32)
    b1 = params["bn1_b"].reshape(c1, 4).T.reshape(1, 4 * c1).astype(f32)
    ops = [w1, g1, b1]

    # three k=5, s=2, p=2, op=1 layers: exact weights + one merged scatter each
    l_in = 4
    for i in range(3):
        cv = params["convs"][i]
        w = cv["w"]                                             # (c_in, c_out, 5)
        c_in, c_out, k = w.shape
        wr = jnp.transpose(w, (0, 2, 1)).reshape(c_in, k * c_out).astype(bf16)
        s = jnp.asarray(
            _merged_scatter(l_in, batch, k, cv["stride"], cv["padding"],
                            cv["output_padding"], in_batch_major=(i != 0)), f32)
        ops += [wr, s,
                cv["g"].reshape(1, c_out).astype(f32),
                cv["b"].reshape(1, c_out).astype(f32)]
        l_in *= 2

    # k=3, s=3 layer (3 output taps kept packed per row)
    cv = params["convs"][3]
    w4 = jnp.transpose(cv["w"], (0, 2, 1)).reshape(dim, 3 * dim).astype(bf16)
    ops += [w4, cv["g"].reshape(1, dim).astype(f32),
            cv["b"].reshape(1, dim).astype(f32)]

    # k=7, s=7 final layer: block-diag over the 3 packed taps, columns -> 128
    w5 = np.asarray(params["convs"][4]["w"], np.float32)[:, 0, :]   # (dim, 7)
    w5blk = np.zeros((3 * dim, 128), np.float32)
    for p in range(3):
        w5blk[p * dim:(p + 1) * dim, p * 7:(p + 1) * 7] = w5
    ops.append(jnp.asarray(w5blk, bf16))
    return tuple(ops)


def make_generator(params, in_dim, dim, batch):
    """Builds a jitted forward(x) for a fixed batch size (no batch padding)."""
    operands = _prepare_operands(params, in_dim, dim, batch)
    assert len(operands) == 19

    kernel = functools.partial(_generator_kernel, eps=1e-5)
    n_inputs = 1 + len(operands)
    call = pl.pallas_call(
        kernel,
        out_shape=jax.ShapeDtypeStruct((32 * batch, 128), jnp.float32),
        in_specs=[pl.BlockSpec(memory_space=pltpu.MemorySpace.VMEM)] * n_inputs,
        out_specs=pl.BlockSpec(memory_space=pltpu.MemorySpace.VMEM),
        compiler_params=pltpu.CompilerParams(
            vmem_limit_bytes=32 * 1024 * 1024),
    )

    @jax.jit
    def forward(x):
        raw = call(x, *operands)                 # (32*N, 128): row = n*32 + l, col < 21 valid
        # batch-major rows + lane-packed fine positions -> pure slice + reshape
        return raw[:, :21].reshape(batch, 1, 96 * 7)

    return forward


# ----------------------------------------------------------------------------
# Parameter init (weights_init: Conv ~ N(0, .02); BN weight ~ N(1, .02), bias 0)
# ----------------------------------------------------------------------------
def init_params(key, in_dim, dim):
    keys = jax.random.split(key, 12)
    c1 = dim * 8
    feat = c1 * 4
    params = {}
    params["w_l1"] = (jax.random.normal(keys[0], (feat, in_dim), jnp.float32)
                      / jnp.sqrt(float(in_dim)))
    params["bn1_g"] = 1.0 + 0.02 * jax.random.normal(keys[1], (feat,), jnp.float32)
    params["bn1_b"] = jnp.zeros((feat,), jnp.float32)
    conv_cfg = [
        (dim * 8, dim * 4, 5, 2, 2, 1),
        (dim * 4, dim * 2, 5, 2, 2, 1),
        (dim * 2, dim,     5, 2, 2, 1),
        (dim,     dim,     3, 3, 0, 0),
        (dim,     1,       7, 7, 0, 0),
    ]
    params["convs"] = []
    for i, (ci, co, k, s, p, op) in enumerate(conv_cfg):
        w = 0.02 * jax.random.normal(keys[2 + 2 * i], (ci, co, k), jnp.float32)
        if i < 4:
            g = 1.0 + 0.02 * jax.random.normal(keys[3 + 2 * i], (co,), jnp.float32)
            b = jnp.zeros((co,), jnp.float32)
        else:
            g, b = None, None
        params["convs"].append(
            dict(w=w, g=g, b=b, stride=s, padding=p, output_padding=op))
    return params


# ----------------------------------------------------------------------------
# Plain-JAX float32 reference of the PyTorch forward (for validation only)
# ----------------------------------------------------------------------------
def _reference_forward(params, x, eps=1e-5):
    n = x.shape[0]
    y = x @ params["w_l1"].T
    mu = jnp.mean(y, axis=0, keepdims=True)
    var = jnp.mean((y - mu) ** 2, axis=0, keepdims=True)
    y = (y - mu) * jax.lax.rsqrt(var + eps) * params["bn1_g"] + params["bn1_b"]
    y = jnp.maximum(y, 0.0)
    c1 = params["bn1_g"].shape[0] // 4
    y = y.reshape(n, c1, 4)                                        # (N, C, L)
    for i, cv in enumerate(params["convs"]):
        w, s, p, op = cv["w"], cv["stride"], cv["padding"], cv["output_padding"]
        c_in, c_out, k = w.shape
        l_in = y.shape[2]
        l_out = (l_in - 1) * s - 2 * p + k + op
        out = jnp.zeros((n, c_out, l_out), jnp.float32)
        for kk in range(k):
            z = jnp.einsum("ncl,cd->ndl", y, w[:, :, kk])
            li0 = max(0, -(-(p - kk) // s))
            li1 = min(l_in - 1, (l_out - 1 + p - kk) // s)
            if li1 >= li0:
                lo0 = li0 * s - p + kk
                out = out.at[:, :, lo0:lo0 + (li1 - li0) * s + 1:s].add(
                    z[:, :, li0:li1 + 1])
        if i < 4:
            mu = jnp.mean(out, axis=(0, 2), keepdims=True)
            var = jnp.mean((out - mu) ** 2, axis=(0, 2), keepdims=True)
            out = ((out - mu) * jax.lax.rsqrt(var + eps) * cv["g"][None, :, None]
                   + cv["b"][None, :, None])
            out = jnp.maximum(out, 0.0)
        y = out
    return jnp.tanh(y)                                             # (N, 1, 672)


# ----------------------------------------------------------------------------
if __name__ == "__main__":
    N, IN_DIM, DIM = 4, 32, 16

    key = jax.random.PRNGKey(0)
    k_param, k_x = jax.random.split(key)
    params = init_params(k_param, IN_DIM, DIM)
    x = jax.random.normal(k_x, (N, IN_DIM), jnp.float32)

    forward = make_generator(params, IN_DIM, DIM, N)
    out = jax.block_until_ready(forward(x))

    assert out.shape == (N, 1, 96 * 7), out.shape
    assert bool(jnp.all(jnp.isfinite(out)))
    assert bool(jnp.all(jnp.abs(out) <= 1.0 + 1e-6))   # tanh range

    # numerical check against the float32 plain-JAX reference
    ref = _reference_forward(params, x)
    rel_l2 = float(jnp.linalg.norm((out - ref).ravel())
                   / (jnp.linalg.norm(ref.ravel()) + 1e-12))
    assert rel_l2 < 0.05, f"relative L2 error vs reference too large: {rel_l2}"

    print("KERNEL_OK")
</pallas_src>

<mosaic_0001>
module attributes {stable_mosaic.version = 11 : i64} {
  func.func @_generator_kernel(%arg0: memref<4x32xf32, #tpu.memory_space<vmem>>, %arg1: memref<32x512xbf16, #tpu.memory_space<vmem>>, %arg2: memref<1x512xf32, #tpu.memory_space<vmem>>, %arg3: memref<1x512xf32, #tpu.memory_space<vmem>>, %arg4: memref<128x320xbf16, #tpu.memory_space<vmem>>, %arg5: memref<32x80xf32, #tpu.memory_space<vmem>>, %arg6: memref<1x64xf32, #tpu.memory_space<vmem>>, %arg7: memref<1x64xf32, #tpu.memory_space<vmem>>, %arg8: memref<64x160xbf16, #tpu.memory_space<vmem>>, %arg9: memref<64x160xf32, #tpu.memory_space<vmem>>, %arg10: memref<1x32xf32, #tpu.memory_space<vmem>>, %arg11: memref<1x32xf32, #tpu.memory_space<vmem>>, %arg12: memref<32x80xbf16, #tpu.memory_space<vmem>>, %arg13: memref<128x320xf32, #tpu.memory_space<vmem>>, %arg14: memref<1x16xf32, #tpu.memory_space<vmem>>, %arg15: memref<1x16xf32, #tpu.memory_space<vmem>>, %arg16: memref<16x48xbf16, #tpu.memory_space<vmem>>, %arg17: memref<1x16xf32, #tpu.memory_space<vmem>>, %arg18: memref<1x16xf32, #tpu.memory_space<vmem>>, %arg19: memref<48x128xbf16, #tpu.memory_space<vmem>>, %arg20: memref<128x128xf32, #tpu.memory_space<vmem>>) attributes {dimension_semantics = [], scalar_prefetch = 0 : i64, scratch_operands = 0 : i64, tpu.core_type = #tpu.core_type<tc>} {
    %c0 = arith.constant 0 : index
    %c0_0 = arith.constant 0 : index
    %0 = vector.load %arg0[%c0, %c0_0] : memref<4x32xf32, #tpu.memory_space<vmem>>, vector<4x32xf32>
    %1 = arith.truncf %0 : vector<4x32xf32> to vector<4x32xbf16>
    %c0_1 = arith.constant 0 : index
    %c0_2 = arith.constant 0 : index
    %2 = vector.load %arg1[%c0_1, %c0_2] : memref<32x512xbf16, #tpu.memory_space<vmem>>, vector<32x512xbf16>
    %cst = arith.constant dense<0.000000e+00> : vector<4x512xf32>
    %3 = tpu.matmul %1, %2, %cst {dimension_numbers = #tpu.dot_dimension_numbers<[1], [0], [0], [1], [0, 0, 1, 1], [], []>} : vector<4x32xbf16>, vector<32x512xbf16>, vector<4x512xf32> -> vector<4x512xf32>
    %c0_3 = arith.constant 0 : index
    %c0_4 = arith.constant 0 : index
    %4 = vector.load %arg2[%c0_3, %c0_4] : memref<1x512xf32, #tpu.memory_space<vmem>>, vector<1x512xf32>
    %c0_5 = arith.constant 0 : index
    %c0_6 = arith.constant 0 : index
    %5 = vector.load %arg3[%c0_5, %c0_6] : memref<1x512xf32, #tpu.memory_space<vmem>>, vector<1x512xf32>
    %cst_7 = arith.constant dense<0.000000e+00> : vector<512xf32>
    %6 = vector.multi_reduction <add>, %3, %cst_7 [0] : vector<4x512xf32> to vector<512xf32>
    %7 = vector.shape_cast %6 : vector<512xf32> to vector<1x512xf32>
    %cst_8 = arith.constant 2.500000e-01 : f32
    %8 = vector.broadcast %cst_8 : f32 to vector<1x512xf32>
    %9 = arith.mulf %7, %8 : vector<1x512xf32>
    %10 = vector.broadcast %9 : vector<1x512xf32> to vector<4x512xf32>
    %11 = arith.subf %3, %10 : vector<4x512xf32>
    %12 = arith.mulf %11, %11 : vector<4x512xf32>
    %cst_9 = arith.constant dense<0.000000e+00> : vector<512xf32>
    %13 = vector.multi_reduction <add>, %12, %cst_9 [0] : vector<4x512xf32> to vector<512xf32>
    %14 = vector.shape_cast %13 : vector<512xf32> to vector<1x512xf32>
    %cst_10 = arith.constant 2.500000e-01 : f32
    %15 = vector.broadcast %cst_10 : f32 to vector<1x512xf32>
    %16 = arith.mulf %14, %15 : vector<1x512xf32>
    %cst_11 = arith.constant 9.99999974E-6 : f32
    %17 = vector.broadcast %cst_11 : f32 to vector<1x512xf32>
    %18 = arith.addf %16, %17 : vector<1x512xf32>
    %19 = math.rsqrt %18 : vector<1x512xf32>
    %20 = arith.mulf %4, %19 : vector<1x512xf32>
    %21 = vector.broadcast %20 : vector<1x512xf32> to vector<4x512xf32>
    %22 = arith.mulf %3, %21 : vector<4x512xf32>
    %23 = arith.mulf %9, %20 : vector<1x512xf32>
    %24 = arith.subf %5, %23 : vector<1x512xf32>
    %25 = vector.broadcast %24 : vector<1x512xf32> to vector<4x512xf32>
    %26 = arith.addf %22, %25 : vector<4x512xf32>
    %cst_12 = arith.constant 0.000000e+00 : f32
    %27 = vector.broadcast %cst_12 : f32 to vector<4x512xf32>
    %28 = arith.maximumf %26, %27 : vector<4x512xf32>
    %29 = vector.extract_strided_slice %28 {offsets = [0, 0], sizes = [4, 128], strides = [1, 1]} : vector<4x512xf32> to vector<4x128xf32>
    %30 = vector.extract_strided_slice %28 {offsets = [0, 128], sizes = [4, 128], strides = [1, 1]} : vector<4x512xf32> to vector<4x128xf32>
    %31 = vector.extract_strided_slice %28 {offsets = [0, 256], sizes = [4, 128], strides = [1, 1]} : vector<4x512xf32> to vector<4x128xf32>
    %32 = vector.extract_strided_slice %28 {offsets = [0, 384], sizes = [4, 128], strides = [1, 1]} : vector<4x512xf32> to vector<4x128xf32>
    %33 = tpu.concatenate %29, %30, %31, %32 in 0 : vector<4x128xf32>, vector<4x128xf32>, vector<4x128xf32>, vector<4x128xf32> -> vector<16x128xf32>
    %34 = arith.truncf %33 : vector<16x128xf32> to vector<16x128xbf16>
    %c0_13 = arith.constant 0 : index
    %c0_14 = arith.constant 0 : index
    %35 = vector.load %arg4[%c0_13, %c0_14] : memref<128x320xbf16, #tpu.memory_space<vmem>>, vector<128x320xbf16>
    %cst_15 = arith.constant dense<0.000000e+00> : vector<16x320xf32>
    %36 = tpu.matmul %34, %35, %cst_15 {dimension_numbers = #tpu.dot_dimension_numbers<[1], [0], [0], [1], [0, 0, 1, 1], [], []>} : vector<16x128xbf16>, vector<128x320xbf16>, vector<16x320xf32> -> vector<16x320xf32>
    %37 = vector.extract_strided_slice %36 {offsets = [0, 0], sizes = [16, 64], strides = [1, 1]} : vector<16x320xf32> to vector<16x64xf32>
    %38 = vector.extract_strided_slice %36 {offsets = [0, 64], sizes = [16, 64], strides = [1, 1]} : vector<16x320xf32> to vector<16x64xf32>
    %39 = vector.extract_strided_slice %36 {offsets = [0, 128], sizes = [16, 64], strides = [1, 1]} : vector<16x320xf32> to vector<16x64xf32>
    %40 = vector.extract_strided_slice %36 {offsets = [0, 192], sizes = [16, 64], strides = [1, 1]} : vector<16x320xf32> to vector<16x64xf32>
    %41 = vector.extract_strided_slice %36 {offsets = [0, 256], sizes = [16, 64], strides = [1, 1]} : vector<16x320xf32> to vector<16x64xf32>
    %42 = tpu.concatenate %37, %38, %39, %40, %41 in 0 : vector<16x64xf32>, vector<16x64xf32>, vector<16x64xf32>, vector<16x64xf32>, vector<16x64xf32> -> vector<80x64xf32>
    %c0_16 = arith.constant 0 : index
    %c0_17 = arith.constant 0 : index
    %43 = vector.load %arg5[%c0_16, %c0_17] : memref<32x80xf32, #tpu.memory_space<vmem>>, vector<32x80xf32>
    %cst_18 = arith.constant dense<0.000000e+00> : vector<32x64xf32>
    %44 = tpu.matmul %43, %42, %cst_18 {dimension_numbers = #tpu.dot_dimension_numbers<[1], [0], [0], [1], [0, 0, 1, 1], [], []>} : vector<32x80xf32>, vector<80x64xf32>, vector<32x64xf32> -> vector<32x64xf32>
    %c0_19 = arith.constant 0 : index
    %c0_20 = arith.constant 0 : index
    %45 = vector.load %arg6[%c0_19, %c0_20] : memref<1x64xf32, #tpu.memory_space<vmem>>, vector<1x64xf32>
    %c0_21 = arith.constant 0 : index
    %c0_22 = arith.constant 0 : index
    %46 = vector.load %arg7[%c0_21, %c0_22] : memref<1x64xf32, #tpu.memory_space<vmem>>, vector<1x64xf32>
    %cst_23 = arith.constant dense<0.000000e+00> : vector<64xf32>
    %47 = vector.multi_reduction <add>, %44, %cst_23 [0] : vector<32x64xf32> to vector<64xf32>
    %48 = vector.shape_cast %47 : vector<64xf32> to vector<1x64xf32>
    %cst_24 = arith.constant 3.125000e-02 : f32
    %49 = vector.broadcast %cst_24 : f32 to vector<1x64xf32>
    %50 = arith.mulf %48, %49 : vector<1x64xf32>
    %51 = vector.broadcast %50 : vector<1x64xf32> to vector<32x64xf32>
    %52 = arith.subf %44, %51 : vector<32x64xf32>
    %53 = arith.mulf %52, %52 : vector<32x64xf32>
    %cst_25 = arith.constant dense<0.000000e+00> : vector<64xf32>
    %54 = vector.multi_reduction <add>, %53, %cst_25 [0] : vector<32x64xf32> to vector<64xf32>
    %55 = vector.shape_cast %54 : vector<64xf32> to vector<1x64xf32>
    %cst_26 = arith.constant 3.125000e-02 : f32
    %56 = vector.broadcast %cst_26 : f32 to vector<1x64xf32>
    %57 = arith.mulf %55, %56 : vector<1x64xf32>
    %cst_27 = arith.constant 9.99999974E-6 : f32
    %58 = vector.broadcast %cst_27 : f32 to vector<1x64xf32>
    %59 = arith.addf %57, %58 : vector<1x64xf32>
    %60 = math.rsqrt %59 : vector<1x64xf32>
    %61 = arith.mulf %45, %60 : vector<1x64xf32>
    %62 = vector.broadcast %61 : vector<1x64xf32> to vector<32x64xf32>
    %63 = arith.mulf %44, %62 : vector<32x64xf32>
    %64 = arith.mulf %50, %61 : vector<1x64xf32>
    %65 = arith.subf %46, %64 : vector<1x64xf32>
    %66 = vector.broadcast %65 : vector<1x64xf32> to vector<32x64xf32>
    %67 = arith.addf %63, %66 : vector<32x64xf32>
    %cst_28 = arith.constant 0.000000e+00 : f32
    %68 = vector.broadcast %cst_28 : f32 to vector<32x64xf32>
    %69 = arith.maximumf %67, %68 : vector<32x64xf32>
    %70 = arith.truncf %69 : vector<32x64xf32> to vector<32x64xbf16>
    %c0_29 = arith.constant 0 : index
    %c0_30 = arith.constant 0 : index
    %71 = vector.load %arg8[%c0_29, %c0_30] : memref<64x160xbf16, #tpu.memory_space<vmem>>, vector<64x160xbf16>
    %cst_31 = arith.constant dense<0.000000e+00> : vector<32x160xf32>
    %72 = tpu.matmul %70, %71, %cst_31 {dimension_numbers = #tpu.dot_dimension_numbers<[1], [0], [0], [1], [0, 0, 1, 1], [], []>} : vector<32x64xbf16>, vector<64x160xbf16>, vector<32x160xf32> -> vector<32x160xf32>
    %73 = vector.extract_strided_slice %72 {offsets = [0, 0], sizes = [32, 32], strides = [1, 1]} : vector<32x160xf32> to vector<32x32xf32>
    %74 = vector.extract_strided_slice %72 {offsets = [0, 32], sizes = [32, 32], strides = [1, 1]} : vector<32x160xf32> to vector<32x32xf32>
    %75 = vector.extract_strided_slice %72 {offsets = [0, 64], sizes = [32, 32], strides = [1, 1]} : vector<32x160xf32> to vector<32x32xf32>
    %76 = vector.extract_strided_slice %72 {offsets = [0, 96], sizes = [32, 32], strides = [1, 1]} : vector<32x160xf32> to vector<32x32xf32>
    %77 = vector.extract_strided_slice %72 {offsets = [0, 128], sizes = [32, 32], strides = [1, 1]} : vector<32x160xf32> to vector<32x32xf32>
    %78 = tpu.concatenate %73, %74, %75, %76, %77 in 0 : vector<32x32xf32>, vector<32x32xf32>, vector<32x32xf32>, vector<32x32xf32>, vector<32x32xf32> -> vector<160x32xf32>
    %c0_32 = arith.constant 0 : index
    %c0_33 = arith.constant 0 : index
    %79 = vector.load %arg9[%c0_32, %c0_33] : memref<64x160xf32, #tpu.memory_space<vmem>>, vector<64x160xf32>
    %cst_34 = arith.constant dense<0.000000e+00> : vector<64x32xf32>
    %80 = tpu.matmul %79, %78, %cst_34 {dimension_numbers = #tpu.dot_dimension_numbers<[1], [0], [0], [1], [0, 0, 1, 1], [], []>} : vector<64x160xf32>, vector<160x32xf32>, vector<64x32xf32> -> vector<64x32xf32>
    %c0_35 = arith.constant 0 : index
    %c0_36 = arith.constant 0 : index
    %81 = vector.load %arg10[%c0_35, %c0_36] : memref<1x32xf32, #tpu.memory_space<vmem>>, vector<1x32xf32>
    %c0_37 = arith.constant 0 : index
    %c0_38 = arith.constant 0 : index
    %82 = vector.load %arg11[%c0_37, %c0_38] : memref<1x32xf32, #tpu.memory_space<vmem>>, vector<1x32xf32>
    %cst_39 = arith.constant dense<0.000000e+00> : vector<32xf32>
    %83 = vector.multi_reduction <add>, %80, %cst_39 [0] : vector<64x32xf32> to vector<32xf32>
    %84 = vector.shape_cast %83 : vector<32xf32> to vector<1x32xf32>
    %cst_40 = arith.constant 1.562500e-02 : f32
    %85 = vector.broadcast %cst_40 : f32 to vector<1x32xf32>
    %86 = arith.mulf %84, %85 : vector<1x32xf32>
    %87 = vector.broadcast %86 : vector<1x32xf32> to vector<64x32xf32>
    %88 = arith.subf %80, %87 : vector<64x32xf32>
    %89 = arith.mulf %88, %88 : vector<64x32xf32>
    %cst_41 = arith.constant dense<0.000000e+00> : vector<32xf32>
    %90 = vector.multi_reduction <add>, %89, %cst_41 [0] : vector<64x32xf32> to vector<32xf32>
    %91 = vector.shape_cast %90 : vector<32xf32> to vector<1x32xf32>
    %cst_42 = arith.constant 1.562500e-02 : f32
    %92 = vector.broadcast %cst_42 : f32 to vector<1x32xf32>
    %93 = arith.mulf %91, %92 : vector<1x32xf32>
    %cst_43 = arith.constant 9.99999974E-6 : f32
    %94 = vector.broadcast %cst_43 : f32 to vector<1x32xf32>
    %95 = arith.addf %93, %94 : vector<1x32xf32>
    %96 = math.rsqrt %95 : vector<1x32xf32>
    %97 = arith.mulf %81, %96 : vector<1x32xf32>
    %98 = vector.broadcast %97 : vector<1x32xf32> to vector<64x32xf32>
    %99 = arith.mulf %80, %98 : vector<64x32xf32>
    %100 = arith.mulf %86, %97 : vector<1x32xf32>
    %101 = arith.subf %82, %100 : vector<1x32xf32>
    %102 = vector.broadcast %101 : vector<1x32xf32> to vector<64x32xf32>
    %103 = arith.addf %99, %102 : vector<64x32xf32>
    %cst_44 = arith.constant 0.000000e+00 : f32
    %104 = vector.broadcast %cst_44 : f32 to vector<64x32xf32>
    %105 = arith.maximumf %103, %104 : vector<64x32xf32>
    %106 = arith.truncf %105 : vector<64x32xf32> to vector<64x32xbf16>
    %c0_45 = arith.constant 0 : index
    %c0_46 = arith.constant 0 : index
    %107 = vector.load %arg12[%c0_45, %c0_46] : memref<32x80xbf16, #tpu.memory_space<vmem>>, vector<32x80xbf16>
    %cst_47 = arith.constant dense<0.000000e+00> : vector<64x80xf32>
    %108 = tpu.matmul %106, %107, %cst_47 {dimension_numbers = #tpu.dot_dimension_numbers<[1], [0], [0], [1], [0, 0, 1, 1], [], []>} : vector<64x32xbf16>, vector<32x80xbf16>, vector<64x80xf32> -> vector<64x80xf32>
    %109 = vector.extract_strided_slice %108 {offsets = [0, 0], sizes = [64, 16], strides = [1, 1]} : vector<64x80xf32> to vector<64x16xf32>
    %110 = vector.extract_strided_slice %108 {offsets = [0, 16], sizes = [64, 16], strides = [1, 1]} : vector<64x80xf32> to vector<64x16xf32>
    %111 = vector.extract_strided_slice %108 {offsets = [0, 32], sizes = [64, 16], strides = [1, 1]} : vector<64x80xf32> to vector<64x16xf32>
    %112 = vector.extract_strided_slice %108 {offsets = [0, 48], sizes = [64, 16], strides = [1, 1]} : vector<64x80xf32> to vector<64x16xf32>
    %113 = vector.extract_strided_slice %108 {offsets = [0, 64], sizes = [64, 16], strides = [1, 1]} : vector<64x80xf32> to vector<64x16xf32>
    %114 = tpu.concatenate %109, %110, %111, %112, %113 in 0 : vector<64x16xf32>, vector<64x16xf32>, vector<64x16xf32>, vector<64x16xf32>, vector<64x16xf32> -> vector<320x16xf32>
    %c0_48 = arith.constant 0 : index
    %c0_49 = arith.constant 0 : index
    %115 = vector.load %arg13[%c0_48, %c0_49] : memref<128x320xf32, #tpu.memory_space<vmem>>, vector<128x320xf32>
    %cst_50 = arith.constant dense<0.000000e+00> : vector<128x16xf32>
    %116 = tpu.matmul %115, %114, %cst_50 {dimension_numbers = #tpu.dot_dimension_numbers<[1], [0], [0], [1], [0, 0, 1, 1], [], []>} : vector<128x320xf32>, vector<320x16xf32>, vector<128x16xf32> -> vector<128x16xf32>
    %c0_51 = arith.constant 0 : index
    %c0_52 = arith.constant 0 : index
    %117 = vector.load %arg14[%c0_51, %c0_52] : memref<1x16xf32, #tpu.memory_space<vmem>>, vector<1x16xf32>
    %c0_53 = arith.constant 0 : index
    %c0_54 = arith.constant 0 : index
    %118 = vector.load %arg15[%c0_53, %c0_54] : memref<1x16xf32, #tpu.memory_space<vmem>>, vector<1x16xf32>
    %cst_55 = arith.constant dense<0.000000e+00> : vector<16xf32>
    %119 = vector.multi_reduction <add>, %116, %cst_55 [0] : vector<128x16xf32> to vector<16xf32>
    %120 = vector.shape_cast %119 : vector<16xf32> to vector<1x16xf32>
    %cst_56 = arith.constant 7.812500e-03 : f32
    %121 = vector.broadcast %cst_56 : f32 to vector<1x16xf32>
    %122 = arith.mulf %120, %121 : vector<1x16xf32>
    %123 = vector.broadcast %122 : vector<1x16xf32> to vector<128x16xf32>
    %124 = arith.subf %116, %123 : vector<128x16xf32>
    %125 = arith.mulf %124, %124 : vector<128x16xf32>
    %cst_57 = arith.constant dense<0.000000e+00> : vector<16xf32>
    %126 = vector.multi_reduction <add>, %125, %cst_57 [0] : vector<128x16xf32> to vector<16xf32>
    %127 = vector.shape_cast %126 : vector<16xf32> to vector<1x16xf32>
    %cst_58 = arith.constant 7.812500e-03 : f32
    %128 = vector.broadcast %cst_58 : f32 to vector<1x16xf32>
    %129 = arith.mulf %127, %128 : vector<1x16xf32>
    %cst_59 = arith.constant 9.99999974E-6 : f32
    %130 = vector.broadcast %cst_59 : f32 to vector<1x16xf32>
    %131 = arith.addf %129, %130 : vector<1x16xf32>
    %132 = math.rsqrt %131 : vector<1x16xf32>
    %133 = arith.mulf %117, %132 : vector<1x16xf32>
    %134 = vector.broadcast %133 : vector<1x16xf32> to vector<128x16xf32>
    %135 = arith.mulf %116, %134 : vector<128x16xf32>
    %136 = arith.mulf %122, %133 : vector<1x16xf32>
    %137 = arith.subf %118, %136 : vector<1x16xf32>
    %138 = vector.broadcast %137 : vector<1x16xf32> to vector<128x16xf32>
    %139 = arith.addf %135, %138 : vector<128x16xf32>
    %cst_60 = arith.constant 0.000000e+00 : f32
    %140 = vector.broadcast %cst_60 : f32 to vector<128x16xf32>
    %141 = arith.maximumf %139, %140 : vector<128x16xf32>
    %142 = arith.truncf %141 : vector<128x16xf32> to vector<128x16xbf16>
    %c0_61 = arith.constant 0 : index
    %c0_62 = arith.constant 0 : index
    %143 = vector.load %arg16[%c0_61, %c0_62] : memref<16x48xbf16, #tpu.memory_space<vmem>>, vector<16x48xbf16>
    %cst_63 = arith.constant dense<0.000000e+00> : vector<128x48xf32>
    %144 = tpu.matmul %142, %143, %cst_63 {dimension_numbers = #tpu.dot_dimension_numbers<[1], [0], [0], [1], [0, 0, 1, 1], [], []>} : vector<128x16xbf16>, vector<16x48xbf16>, vector<128x48xf32> -> vector<128x48xf32>
    %cst_64 = arith.constant dense<0.000000e+00> : vector<48xf32>
    %145 = vector.multi_reduction <add>, %144, %cst_64 [0] : vector<128x48xf32> to vector<48xf32>
    %146 = vector.shape_cast %145 : vector<48xf32> to vector<1x48xf32>
    %147 = vector.extract_strided_slice %146 {offsets = [0, 0], sizes = [1, 16], strides = [1, 1]} : vector<1x48xf32> to vector<1x16xf32>
    %148 = vector.extract_strided_slice %146 {offsets = [0, 16], sizes = [1, 16], strides = [1, 1]} : vector<1x48xf32> to vector<1x16xf32>
    %149 = arith.addf %147, %148 : vector<1x16xf32>
    %150 = vector.extract_strided_slice %146 {offsets = [0, 32], sizes = [1, 16], strides = [1, 1]} : vector<1x48xf32> to vector<1x16xf32>
    %151 = arith.addf %149, %150 : vector<1x16xf32>
    %cst_65 = arith.constant 0.00260416674 : f32
    %152 = vector.broadcast %cst_65 : f32 to vector<1x16xf32>
    %153 = arith.mulf %151, %152 : vector<1x16xf32>
    %154 = tpu.concatenate %153, %153, %153 in 1 : vector<1x16xf32>, vector<1x16xf32>, vector<1x16xf32> -> vector<1x48xf32>
    %155 = vector.broadcast %154 : vector<1x48xf32> to vector<128x48xf32>
    %156 = arith.subf %144, %155 : vector<128x48xf32>
    %157 = arith.mulf %156, %156 : vector<128x48xf32>
    %cst_66 = arith.constant dense<0.000000e+00> : vector<48xf32>
    %158 = vector.multi_reduction <add>, %157, %cst_66 [0] : vector<128x48xf32> to vector<48xf32>
    %159 = vector.shape_cast %158 : vector<48xf32> to vector<1x48xf32>
    %160 = vector.extract_strided_slice %159 {offsets = [0, 0], sizes = [1, 16], strides = [1, 1]} : vector<1x48xf32> to vector<1x16xf32>
    %161 = vector.extract_strided_slice %159 {offsets = [0, 16], sizes = [1, 16], strides = [1, 1]} : vector<1x48xf32> to vector<1x16xf32>
    %162 = arith.addf %160, %161 : vector<1x16xf32>
    %163 = vector.extract_strided_slice %159 {offsets = [0, 32], sizes = [1, 16], strides = [1, 1]} : vector<1x48xf32> to vector<1x16xf32>
    %164 = arith.addf %162, %163 : vector<1x16xf32>
    %cst_67 = arith.constant 0.00260416674 : f32
    %165 = vector.broadcast %cst_67 : f32 to vector<1x16xf32>
    %166 = arith.mulf %164, %165 : vector<1x16xf32>
    %c0_68 = arith.constant 0 : index
    %c0_69 = arith.constant 0 : index
    %167 = vector.load %arg17[%c0_68, %c0_69] : memref<1x16xf32, #tpu.memory_space<vmem>>, vector<1x16xf32>
    %cst_70 = arith.constant 9.99999974E-6 : f32
    %168 = vector.broadcast %cst_70 : f32 to vector<1x16xf32>
    %169 = arith.addf %166, %168 : vector<1x16xf32>
    %170 = math.rsqrt %169 : vector<1x16xf32>
    %171 = arith.mulf %167, %170 : vector<1x16xf32>
    %c0_71 = arith.constant 0 : index
    %c0_72 = arith.constant 0 : index
    %172 = vector.load %arg18[%c0_71, %c0_72] : memref<1x16xf32, #tpu.memory_space<vmem>>, vector<1x16xf32>
    %173 = arith.mulf %153, %171 : vector<1x16xf32>
    %174 = arith.subf %172, %173 : vector<1x16xf32>
    %175 = tpu.concatenate %171, %171, %171 in 1 : vector<1x16xf32>, vector<1x16xf32>, vector<1x16xf32> -> vector<1x48xf32>
    %176 = tpu.concatenate %174, %174, %174 in 1 : vector<1x16xf32>, vector<1x16xf32>, vector<1x16xf32> -> vector<1x48xf32>
    %177 = vector.broadcast %175 : vector<1x48xf32> to vector<128x48xf32>
    %178 = arith.mulf %144, %177 : vector<128x48xf32>
    %179 = vector.broadcast %176 : vector<1x48xf32> to vector<128x48xf32>
    %180 = arith.addf %178, %179 : vector<128x48xf32>
    %cst_73 = arith.constant 0.000000e+00 : f32
    %181 = vector.broadcast %cst_73 : f32 to vector<128x48xf32>
    %182 = arith.maximumf %180, %181 : vector<128x48xf32>
    %183 = arith.truncf %182 : vector<128x48xf32> to vector<128x48xbf16>
    %c0_74 = arith.constant 0 : index
    %c0_75 = arith.constant 0 : index
    %184 = vector.load %arg19[%c0_74, %c0_75] : memref<48x128xbf16, #tpu.memory_space<vmem>>, vector<48x128xbf16>
    %cst_76 = arith.constant dense<0.000000e+00> : vector<128x128xf32>
    %185 = tpu.matmul %183, %184, %cst_76 {dimension_numbers = #tpu.dot_dimension_numbers<[1], [0], [0], [1], [0, 0, 1, 1], [], []>} : vector<128x48xbf16>, vector<48x128xbf16>, vector<128x128xf32> -> vector<128x128xf32>
    %186 = math.tanh %185 : vector<128x128xf32>
    %c0_77 = arith.constant 0 : index
    %c0_78 = arith.constant 0 : index
    %187 = vector.load %arg20[%c0_77, %c0_78] : memref<128x128xf32, #tpu.memory_space<vmem>>, vector<128x128xf32>
    tpu.vector_store %arg20[%c0_77, %c0_78], %186 {strides = array<i32>} : memref<128x128xf32, #tpu.memory_space<vmem>>, vector<128x128xf32>,
    return
  }
}

</mosaic_0001>

<llo_original>
// kernel: forward.1
$region0: #{forward.1}
  #allocation0 [shape = 'u32[]', space=smem, size = 0x4, offset = 0x4, fixed_abs, tag = 'smem constant byte address 0x4 - core index']
  #allocation1 [shape = 'u32[144,128]{1,0:T(1,128)}', space=vmem, size = 0x12000, scoped, tag = 'internal scratch']
  %s0 = inlined_call_operand.hbm [shape: f32[4,32], index: 0, kind: input, shape index: {}]
  %s1 = inlined_call_operand.vmem [shape: bf16[32,512], index: 1, kind: input, shape index: {}]
  %s2 = inlined_call_operand.hbm [shape: f32[1,512], index: 2, kind: input, shape index: {}]
  %s3 = inlined_call_operand.vmem [shape: f32[1,512], index: 3, kind: input, shape index: {}]
  %s4 = inlined_call_operand.vmem [shape: bf16[128,320], index: 4, kind: input, shape index: {}]
  %s5 = inlined_call_operand.hbm [shape: f32[32,80], index: 5, kind: input, shape index: {}]
  %s6 = inlined_call_operand.hbm [shape: f32[1,64], index: 6, kind: input, shape index: {}]
  %s7 = inlined_call_operand.vmem [shape: f32[1,64], index: 7, kind: input, shape index: {}]
  %s8 = inlined_call_operand.vmem [shape: bf16[64,160], index: 8, kind: input, shape index: {}]
  %s9 = inlined_call_operand.vmem [shape: f32[64,160], index: 9, kind: input, shape index: {}]
  %s10 = inlined_call_operand.hbm [shape: f32[1,32], index: 10, kind: input, shape index: {}]
  %s11 = inlined_call_operand.vmem [shape: f32[1,32], index: 11, kind: input, shape index: {}]
  %s12 = inlined_call_operand.hbm [shape: bf16[32,80], index: 12, kind: input, shape index: {}]
  %s13 = inlined_call_operand.vmem [shape: f32[128,320], index: 13, kind: input, shape index: {}]
  %s14 = inlined_call_operand.hbm [shape: f32[1,16], index: 14, kind: input, shape index: {}]
  %s15 = inlined_call_operand.vmem [shape: f32[1,16], index: 15, kind: input, shape index: {}, may-alias: {15,18}]
  %s16 = inlined_call_operand.vmem [shape: bf16[16,48], index: 16, kind: input, shape index: {}]
  %s17 = inlined_call_operand.vmem [shape: f32[1,16], index: 17, kind: input, shape index: {}]
  %s18 = inlined_call_operand.vmem [shape: f32[1,16], index: 18, kind: input, shape index: {}, may-alias: {15,18}]
  %s19 = inlined_call_operand.hbm [shape: bf16[48,128], index: 19, kind: input, shape index: {}]
  %s20 = inlined_call_operand.vmem [shape: f32[128,128], index: 20, kind: output, shape index: {}]
  %s21 = sld [smem:[#allocation0]]
  $region122: #{forward.1} parent=0
    _
  %s23 = ssub.s32 1, %s21
  %s24 = scalar_select 0, %s23, %s21
  $region1: #{forward.1} parent=0
    #allocation2 [shape = 'u8[2048]{0}', space=vmem, size = 0x800, scoped, tag = 'input window, operand 0, single buffered']
    #allocation3 [shape = 's32[1]{0}', space=sflag, size = 0x4, scoped, tag = 'scoped memory for forward.1']
    #allocation4 [shape = 'u8[2048]{0}', space=vmem, size = 0x800, scoped, tag = 'input window, operand 2, single buffered']
    #allocation5 [shape = 's32[1]{0}', space=sflag, size = 0x4, scoped, tag = 'scoped memory for forward.1']
    #allocation6 [shape = 'u8[16384]{0}', space=vmem, size = 0x4000, scoped, tag = 'input window, operand 5, single buffered']
    #allocation7 [shape = 'u8[512]{0}', space=vmem, size = 0x400, scoped, tag = 'input window, operand 6, single buffered']
    #allocation8 [shape = 's32[1]{0}', space=sflag, size = 0x4, scoped, tag = 'scoped memory for forward.1']
    #allocation9 [shape = 'u8[512]{0}', space=vmem, size = 0x400, scoped, tag = 'input window, operand 10, single buffered']
    #allocation10 [shape = 'u8[8192]{0}', space=vmem, size = 0x2000, scoped, tag = 'input window, operand 12, single buffered']
    #allocation11 [shape = 's32[1]{0}', space=sflag, size = 0x4, scoped, tag = 'scoped memory for forward.1']
    #allocation12 [shape = 'u8[512]{0}', space=vmem, size = 0x400, scoped, tag = 'input window, operand 14, single buffered']
    #allocation13 [shape = 'u8[12288]{0}', space=vmem, size = 0x3000, scoped, tag = 'input window, operand 19, single buffered']
    #allocation14 [shape = 's32[1]{0}', space=sflag, size = 0x4, scoped, tag = 'scoped memory for forward.1']
    %25 = vsyncpa [#allocation3], 0
    %26 = vsyncpa [#allocation5], 0
    %27 = vsyncpa [#allocation8], 0
    %28 = vsyncpa [#allocation11], 0
    %29 = vsyncpa [#allocation14], 0
    // Predicated region
    $region2: #{forward.1} parent=1 // pred_check
      _
    $region3: #{forward.1} parent=1 // pred_check_branch
      %31 = sbr.rel (0) target = $region5
    $region4: #{forward.1} parent=1 // pred_region
      %s33 = ssub.s32 64, 64
      %34 = vsyncadd [#allocation3], %s33
      %s36 = sshll.u32 [#allocation2], 4
      %s37 = int_to_ptr.vmem [resolvable:$true] %s36
      %39 = dma.hbm_to_vmem [thread:$0]  %s0, 64, %s37, [#allocation3]
    $region5: #{forward.1} parent=1 // pred_fallthru
      _
    // Predicated region
    $region6: #{forward.1} parent=1 // pred_check
      _
    $region7: #{forward.1} parent=1 // pred_check_branch
      %41 = sbr.rel (0) target = $region9
    $region8: #{forward.1} parent=1 // pred_region
      _
    $region9: #{forward.1} parent=1 // pred_fallthru
      _
    // Predicated region
    $region10: #{forward.1} parent=1 // pred_check
      _
    $region11: #{forward.1} parent=1 // pred_check_branch
      %43 = sbr.rel (0) target = $region13
    $region12: #{forward.1} parent=1 // pred_region
      %s45 = ssub.s32 64, 64
      %46 = vsyncadd [#allocation5], %s45
      %s48 = sshll.u32 [#allocation4], 4
      %s49 = int_to_ptr.vmem [resolvable:$true] %s48
      %51 = dma.hbm_to_vmem [thread:$0]  %s2, 64, %s49, [#allocation5]
    $region13: #{forward.1} parent=1 // pred_fallthru
      _
    // Predicated region
    $region14: #{forward.1} parent=1 // pred_check
      _
    $region15: #{forward.1} parent=1 // pred_check_branch
      %53 = sbr.rel (0) target = $region17
    $region16: #{forward.1} parent=1 // pred_region
      _
    $region17: #{forward.1} parent=1 // pred_fallthru
      _
    // Predicated region
    $region18: #{forward.1} parent=1 // pred_check
      _
    $region19: #{forward.1} parent=1 // pred_check_branch
      %55 = sbr.rel (0) target = $region21
    $region20: #{forward.1} parent=1 // pred_region
      _
    $region21: #{forward.1} parent=1 // pred_fallthru
      _
    // Predicated region
    $region22: #{forward.1} parent=1 // pred_check
      _
    $region23: #{forward.1} parent=1 // pred_check_branch
      %57 = sbr.rel (0) target = $region25
    $region24: #{forward.1} parent=1 // pred_region
      %s59 = ssub.s32 512, 512
      %60 = vsyncadd [#allocation5], %s59
      %s61 = sshll.u32 [#allocation6], 4
      %s62 = int_to_ptr.vmem [resolvable:$true] %s61
      %67 = dma.hbm_to_vmem [thread:$0]  %s5, 512, %s62, [#allocation5], 128, 128, 8
    $region25: #{forward.1} parent=1 // pred_fallthru
      _
    // Predicated region
    $region26: #{forward.1} parent=1 // pred_check
      _
    $region27: #{forward.1} parent=1 // pred_check_branch
      %69 = sbr.rel (0) target = $region29
    $region28: #{forward.1} parent=1 // pred_region
      %s71 = ssub.s32 16, 16
      %72 = vsyncadd [#allocation8], %s71
      %s74 = sshll.u32 [#allocation7], 4
      %s75 = int_to_ptr.vmem [resolvable:$true] %s74
      %77 = dma.hbm_to_vmem [thread:$0]  %s6, 16, %s75, [#allocation8]
    $region29: #{forward.1} parent=1 // pred_fallthru
      _
    // Predicated region
    $region30: #{forward.1} parent=1 // pred_check
      _
    $region31: #{forward.1} parent=1 // pred_check_branch
      %79 = sbr.rel (0) target = $region33
    $region32: #{forward.1} parent=1 // pred_region
      _
    $region33: #{forward.1} parent=1 // pred_fallthru
      _
    // Predicated region
    $region34: #{forward.1} parent=1 // pred_check
      _
    $region35: #{forward.1} parent=1 // pred_check_branch
      %81 = sbr.rel (0) target = $region37
    $region36: #{forward.1} parent=1 // pred_region
      _
    $region37: #{forward.1} parent=1 // pred_fallthru
      _
    // Predicated region
    $region38: #{forward.1} parent=1 // pred_check
      _
    $region39: #{forward.1} parent=1 // pred_check_branch
      %83 = sbr.rel (0) target = $region41
    $region40: #{forward.1} parent=1 // pred_region
      _
    $region41: #{forward.1} parent=1 // pred_fallthru
      _
    // Predicated region
    $region42: #{forward.1} parent=1 // pred_check
      _
    $region43: #{forward.1} parent=1 // pred_check_branch
      %85 = sbr.rel (0) target = $region45
    $region44: #{forward.1} parent=1 // pred_region
      %s87 = ssub.s32 16, 16
      %88 = vsyncadd [#allocation8], %s87
      %s90 = sshll.u32 [#allocation9], 4
      %s91 = int_to_ptr.vmem [resolvable:$true] %s90
      %93 = dma.hbm_to_vmem [thread:$0]  %s10, 16, %s91, [#allocation8]
    $region45: #{forward.1} parent=1 // pred_fallthru
      _
    // Predicated region
    $region46: #{forward.1} parent=1 // pred_check
      _
    $region47: #{forward.1} parent=1 // pred_check_branch
      %95 = sbr.rel (0) target = $region49
    $region48: #{forward.1} parent=1 // pred_region
      _
    $region49: #{forward.1} parent=1 // pred_fallthru
      _
    // Predicated region
    $region50: #{forward.1} parent=1 // pred_check
      _
    $region51: #{forward.1} parent=1 // pred_check_branch
      %97 = sbr.rel (0) target = $region53
    $region52: #{forward.1} parent=1 // pred_region
      %s99 = ssub.s32 256, 256
      %100 = vsyncadd [#allocation11], %s99
      %s101 = sshll.u32 [#allocation10], 4
      %s102 = int_to_ptr.vmem [resolvable:$true] %s101
      %107 = dma.hbm_to_vmem [thread:$0]  %s12, 256, %s102, [#allocation11], 64, 64, 4
    $region53: #{forward.1} parent=1 // pred_fallthru
      _
    // Predicated region
    $region54: #{forward.1} parent=1 // pred_check
      _
    $region55: #{forward.1} parent=1 // pred_check_branch
      %109 = sbr.rel (0) target = $region57
    $region56: #{forward.1} parent=1 // pred_region
      _
    $region57: #{forward.1} parent=1 // pred_fallthru
      _
    // Predicated region
    $region58: #{forward.1} parent=1 // pred_check
      _
    $region59: #{forward.1} parent=1 // pred_check_branch
      %111 = sbr.rel (0) target = $region61
    $region60: #{forward.1} parent=1 // pred_region
      %s113 = ssub.s32 16, 16
      %114 = vsyncadd [#allocation11], %s113
      %s116 = sshll.u32 [#allocation12], 4
      %s117 = int_to_ptr.vmem [resolvable:$true] %s116
      %119 = dma.hbm_to_vmem [thread:$0]  %s14, 16, %s117, [#allocation11]
    $region61: #{forward.1} parent=1 // pred_fallthru
      _
    // Predicated region
    $region62: #{forward.1} parent=1 // pred_check
      _
    $region63: #{forward.1} parent=1 // pred_check_branch
      %121 = sbr.rel (0) target = $region65
    $region64: #{forward.1} parent=1 // pred_region
      _
    $region65: #{forward.1} parent=1 // pred_fallthru
      _
    // Predicated region
    $region66: #{forward.1} parent=1 // pred_check
      _
    $region67: #{forward.1} parent=1 // pred_check_branch
      %123 = sbr.rel (0) target = $region69
    $region68: #{forward.1} parent=1 // pred_region
      _
    $region69: #{forward.1} parent=1 // pred_fallthru
      _
    // Predicated region
    $region70: #{forward.1} parent=1 // pred_check
      _
    $region71: #{forward.1} parent=1 // pred_check_branch
      %125 = sbr.rel (0) target = $region73
    $region72: #{forward.1} parent=1 // pred_region
      _
    $region73: #{forward.1} parent=1 // pred_fallthru
      _
    // Predicated region
    $region74: #{forward.1} parent=1 // pred_check
      _
    $region75: #{forward.1} parent=1 // pred_check_branch
      %127 = sbr.rel (0) target = $region77
    $region76: #{forward.1} parent=1 // pred_region
      _
    $region77: #{forward.1} parent=1 // pred_fallthru
      _
    // Predicated region
    $region78: #{forward.1} parent=1 // pred_check
      _
    $region79: #{forward.1} parent=1 // pred_check_branch
      %129 = sbr.rel (0) target = $region81
    $region80: #{forward.1} parent=1 // pred_region
      %s131 = ssub.s32 384, 384
      %132 = vsyncadd [#allocation14], %s131
      %s133 = sshll.u32 [#allocation13], 4
      %s134 = int_to_ptr.vmem [resolvable:$true] %s133
      %139 = dma.hbm_to_vmem [thread:$0]  %s19, 384, %s134, [#allocation14], 64, 64, 4
    $region81: #{forward.1} parent=1 // pred_fallthru
      _
    // Predicated region
    $region82: #{forward.1} parent=1 // pred_check
      _
    $region83: #{forward.1} parent=1 // pred_check_branch
      %141 = sbr.rel (0) target = $region85
    $region84: #{forward.1} parent=1 // pred_region
      %142 = dma.done [#allocation3], 64
    $region85: #{forward.1} parent=1 // pred_fallthru
      _
    // Predicated region
    $region86: #{forward.1} parent=1 // pred_check
      _
    $region87: #{forward.1} parent=1 // pred_check_branch
      %144 = sbr.rel (0) target = $region89
    $region88: #{forward.1} parent=1 // pred_region
      %145 = dma.done [#allocation5], 64
    $region89: #{forward.1} parent=1 // pred_fallthru
      _
    // Predicated region
    $region90: #{forward.1} parent=1 // pred_check
      _
    $region91: #{forward.1} parent=1 // pred_check_branch
      %147 = sbr.rel (0) target = $region93
    $region92: #{forward.1} parent=1 // pred_region
      %148 = dma.done [#allocation5], 512
    $region93: #{forward.1} parent=1 // pred_fallthru
      _
    // Predicated region
    $region94: #{forward.1} parent=1 // pred_check
      _
    $region95: #{forward.1} parent=1 // pred_check_branch
      %150 = sbr.rel (0) target = $region97
    $region96: #{forward.1} parent=1 // pred_region
      %151 = dma.done [#allocation8], 16
    $region97: #{forward.1} parent=1 // pred_fallthru
      _
    // Predicated region
    $region98: #{forward.1} parent=1 // pred_check
      _
    $region99: #{forward.1} parent=1 // pred_check_branch
      %153 = sbr.rel (0) target = $region101
    $region100: #{forward.1} parent=1 // pred_region
      %154 = dma.done [#allocation8], 16
    $region101: #{forward.1} parent=1 // pred_fallthru
      _
    // Predicated region
    $region102: #{forward.1} parent=1 // pred_check
      _
    $region103: #{forward.1} parent=1 // pred_check_branch
      %156 = sbr.rel (0) target = $region105
    $region104: #{forward.1} parent=1 // pred_region
      %157 = dma.done [#allocation11], 256
    $region105: #{forward.1} parent=1 // pred_fallthru
      _
    // Predicated region
    $region106: #{forward.1} parent=1 // pred_check
      _
    $region107: #{forward.1} parent=1 // pred_check_branch
      %159 = sbr.rel (0) target = $region109
    $region108: #{forward.1} parent=1 // pred_region
      %160 = dma.done [#allocation11], 16
    $region109: #{forward.1} parent=1 // pred_fallthru
      _
    // Predicated region
    $region110: #{forward.1} parent=1 // pred_check
      _
    $region111: #{forward.1} parent=1 // pred_check_branch
      %162 = sbr.rel (0) target = $region113
    $region112: #{forward.1} parent=1 // pred_region
      %163 = dma.done [#allocation14], 384
    $region113: #{forward.1} parent=1 // pred_fallthru
      _
    %v165 = vld [vmem:[#allocation2] sm:$0xf]
    %v166 = vpack.c.bf16 %v165, %v165
    %v167 = vld [vmem:[%s1] sm:$0xff]
    %v168 = vld [vmem:[%s1 + $0x8] sm:$0xff]
    %v169 = vld [vmem:[%s1 + $0x10] sm:$0xff]
    %v170 = vld [vmem:[%s1 + $0x18] sm:$0xff]
    %v171 = vld [vmem:[%s1 + $0x20] sm:$0xff]
    %v172 = vld [vmem:[%s1 + $0x28] sm:$0xff]
    %v173 = vld [vmem:[%s1 + $0x30] sm:$0xff]
    %v174 = vld [vmem:[%s1 + $0x38] sm:$0xff]
    %v183 = vunpack.c.l.b16 %v167
    %v184 = vunpack.c.h.b16 %v167
    %v185 = vunpack.c.l.b16 %v168
    %v186 = vunpack.c.h.b16 %v168
    %v187 = vunpack.c.l.b16 %v169
    %v188 = vunpack.c.h.b16 %v169
    %v189 = vunpack.c.l.b16 %v170
    %v190 = vunpack.c.h.b16 %v170
    %v191 = vunpack.c.l.b16 %v171
    %v192 = vunpack.c.h.b16 %v171
    %v193 = vunpack.c.l.b16 %v172
    %v194 = vunpack.c.h.b16 %v172
    %v195 = vunpack.c.l.b16 %v173
    %v196 = vunpack.c.h.b16 %v173
    %v197 = vunpack.c.l.b16 %v174
    %v198 = vunpack.c.h.b16 %v174
    %v199 = vpack.c.b16 %v187, %v183
    %v200 = vpack.c.b16 %v188, %v184
    %v201 = vpack.c.b16 %v189, %v185
    %v202 = vpack.c.b16 %v190, %v186
    %v203 = vpack.c.b16 %v195, %v191
    %v204 = vpack.c.b16 %v196, %v192
    %v205 = vpack.c.b16 %v197, %v193
    %v206 = vpack.c.b16 %v198, %v194
    %vm215 = vcmask 261120
    %v217 = vsel %vm215, %v166, 0
    %219 = vmatprep.subr.bf16.mxu0 %v200
    %220 = vmatpush1.bf16.msra.mxu0 %v199
    %221 = vmatprep.subr.bf16.mxu0 %v204
    %222 = vmatpush1.bf16.msra.mxu0 %v203
    %223 = vmatprep.subr.bf16.mxu0 0
    %224 = vmatpush1.bf16.msra.mxu0 0
    %225 = vmatprep.subr.bf16.mxu0 0
    %226 = vmatpush1.bf16.msra.mxu0 0
    %227 = vmatprep.subr.bf16.mxu0 0
    %228 = vmatpush1.bf16.msra.mxu0 0
    %229 = vmatprep.subr.bf16.mxu0 0
    %230 = vmatpush1.bf16.msra.mxu0 0
    %231 = vmatprep.subr.bf16.mxu0 0
    %232 = vmatpush1.bf16.msra.mxu0 0
    %233 = vmatprep.subr.bf16.mxu0 0
    %234 = vmatpush1.bf16.msra.mxu0 0
    %235 = vmatprep.subr.bf16.mxu0 0
    %236 = vmatpush1.bf16.msra.mxu0 0
    %237 = vmatprep.subr.bf16.mxu0 0
    %238 = vmatpush1.bf16.msra.mxu0 0
    %239 = vmatprep.subr.bf16.mxu0 0
    %240 = vmatpush1.bf16.msra.mxu0 0
    %241 = vmatprep.subr.bf16.mxu0 0
    %242 = vmatpush1.bf16.msra.mxu0 0
    %243 = vmatprep.subr.bf16.mxu0 0
    %244 = vmatpush1.bf16.msra.mxu0 0
    %245 = vmatprep.subr.bf16.mxu0 0
    %246 = vmatpush1.bf16.msra.mxu0 0
    %247 = vmatprep.subr.bf16.mxu0 0
    %248 = vmatpush1.bf16.msra.mxu0 0
    %249 = vmatprep.subr.bf16.mxu0 0
    %250 = vmatpush1.bf16.msra.mxu0 0
    %251 = vmatprep.mubr.bf16.mxu0 0
    %252 = vmatmul.mubr.bf16.gmra.mrb[0].mxu0 %v217
    %v253 = vpop.f32.mrb[0].mxu0
    %v254 = vadd.f32 0.0, %v253
    %v255 = vpop.f32.mrb[0].mxu0
    %v256 = vadd.f32 0.0, %v255
    %v257 = vpop.f32.mrb[0].mxu0
    %v258 = vpop.f32.mrb[0].mxu0
    %259 = vdwg.mxu0
    %260 = vmatprep.subr.bf16.mxu0 %v202
    %261 = vmatpush1.bf16.msra.mxu0 %v201
    %262 = vmatprep.subr.bf16.mxu0 %v206
    %263 = vmatpush1.bf16.msra.mxu0 %v205
    %264 = vmatprep.subr.bf16.mxu0 0
    %265 = vmatpush1.bf16.msra.mxu0 0
    %266 = vmatprep.subr.bf16.mxu0 0
    %267 = vmatpush1.bf16.msra.mxu0 0
    %268 = vmatprep.subr.bf16.mxu0 0
    %269 = vmatpush1.bf16.msra.mxu0 0
    %270 = vmatprep.subr.bf16.mxu0 0
    %271 = vmatpush1.bf16.msra.mxu0 0
    %272 = vmatprep.subr.bf16.mxu0 0
    %273 = vmatpush1.bf16.msra.mxu0 0
    %274 = vmatprep.subr.bf16.mxu0 0
    %275 = vmatpush1.bf16.msra.mxu0 0
    %276 = vmatprep.subr.bf16.mxu0 0
    %277 = vmatpush1.bf16.msra.mxu0 0
    %278 = vmatprep.subr.bf16.mxu0 0
    %279 = vmatpush1.bf16.msra.mxu0 0
    %280 = vmatprep.subr.bf16.mxu0 0
    %281 = vmatpush1.bf16.msra.mxu0 0
    %282 = vmatprep.subr.bf16.mxu0 0
    %283 = vmatpush1.bf16.msra.mxu0 0
    %284 = vmatprep.subr.bf16.mxu0 0
    %285 = vmatpush1.bf16.msra.mxu0 0
    %286 = vmatprep.subr.bf16.mxu0 0
    %287 = vmatpush1.bf16.msra.mxu0 0
    %288 = vmatprep.subr.bf16.mxu0 0
    %289 = vmatpush1.bf16.msra.mxu0 0
    %290 = vmatprep.subr.bf16.mxu0 0
    %291 = vmatpush1.bf16.msra.mxu0 0
    %292 = vmatprep.mubr.bf16.mxu0 0
    %293 = vmatmul.mubr.bf16.gmra.mrb[0].mxu0 %v217
    %v294 = vpop.f32.mrb[0].mxu0
    %v295 = vadd.f32 0.0, %v294
    %v296 = vpop.f32.mrb[0].mxu0
    %v297 = vadd.f32 0.0, %v296
    %v298 = vpop.f32.mrb[0].mxu0
    %v299 = vpop.f32.mrb[0].mxu0
    %300 = vdwg.mxu0
    %v301 = vld [vmem:[#allocation4] sm:$0xf]
    %v302 = vld [vmem:[%s3] sm:$0xf]
    %vm303 = vcmask 1043456
    %v304 = vsel %vm303, %v254, 0.0
    %v305 = vrot.slane %v304, 4
    %v306 = vadd.f32 %v304, %v305
    %v307 = vrot.slane %v306, 2
    %v308 = vadd.f32 %v306, %v307
    %v309 = vrot.slane %v308, 1
    %v310 = vadd.f32 %v308, %v309
    %v311 = vsel %vm303, %v256, 0.0
    %v312 = vrot.slane %v311, 4
    %v313 = vadd.f32 %v311, %v312
    %v314 = vrot.slane %v313, 2
    %v315 = vadd.f32 %v313, %v314
    %v316 = vrot.slane %v315, 1
    %v317 = vadd.f32 %v315, %v316
    %v318 = vsel %vm303, %v295, 0.0
    %v319 = vrot.slane %v318, 4
    %v320 = vadd.f32 %v318, %v319
    %v321 = vrot.slane %v320, 2
    %v322 = vadd.f32 %v320, %v321
    %v323 = vrot.slane %v322, 1
    %v324 = vadd.f32 %v322, %v323
    %v325 = vsel %vm303, %v297, 0.0
    %v326 = vrot.slane %v325, 4
    %v327 = vadd.f32 %v325, %v326
    %v328 = vrot.slane %v327, 2
    %v329 = vadd.f32 %v327, %v328
    %v330 = vrot.slane %v329, 1
    %v331 = vadd.f32 %v329, %v330
    %v332 = vmul.f32 %v310, 0.25
    %v333 = vmul.f32 %v317, 0.25
    %v334 = vmul.f32 %v324, 0.25
    %v335 = vmul.f32 %v331, 0.25
    %v336 = vsub.f32 %v254, %v332
    %v337 = vsub.f32 %v256, %v333
    %v338 = vsub.f32 %v295, %v334
    %v339 = vsub.f32 %v297, %v335
    %v340 = vmul.f32 %v336, %v336
    %v341 = vmul.f32 %v337, %v337
    %v342 = vmul.f32 %v338, %v338
    %v343 = vmul.f32 %v339, %v339
    %v344 = vsel %vm303, %v340, 0.0
    %v345 = vrot.slane %v344, 4
    %v346 = vadd.f32 %v344, %v345
    %v347 = vrot.slane %v346, 2
    %v348 = vadd.f32 %v346, %v347
    %v349 = vrot.slane %v348, 1
    %v350 = vadd.f32 %v348, %v349
    %v351 = vsel %vm303, %v341, 0.0
    %v352 = vrot.slane %v351, 4
    %v353 = vadd.f32 %v351, %v352
    %v354 = vrot.slane %v353, 2
    %v355 = vadd.f32 %v353, %v354
    %v356 = vrot.slane %v355, 1
    %v357 = vadd.f32 %v355, %v356
    %v358 = vsel %vm303, %v342, 0.0
    %v359 = vrot.slane %v358, 4
    %v360 = vadd.f32 %v358, %v359
    %v361 = vrot.slane %v360, 2
    %v362 = vadd.f32 %v360, %v361
    %v363 = vrot.slane %v362, 1
    %v364 = vadd.f32 %v362, %v363
    %v365 = vsel %vm303, %v343, 0.0
    %v366 = vrot.slane %v365, 4
    %v367 = vadd.f32 %v365, %v366
    %v368 = vrot.slane %v367, 2
    %v369 = vadd.f32 %v367, %v368
    %v370 = vrot.slane %v369, 1
    %v371 = vadd.f32 %v369, %v370
    %v372 = vmul.f32 %v350, 0.25
    %v373 = vmul.f32 %v357, 0.25
    %v374 = vmul.f32 %v364, 0.25
    %v375 = vmul.f32 %v371, 0.25
    %v376 = vadd.f32 %v372, 1e-05
    %v377 = vadd.f32 %v373, 1e-05
    %v378 = vadd.f32 %v374, 1e-05
    %v379 = vadd.f32 %v375, 1e-05
    %v380 = vrsqrt.pop %v376
    %v381 = vrsqrt.pop %v377
    %v382 = vrsqrt.pop %v378
    %v383 = vrsqrt.pop %v379
    %v388 = vcombine.low %v380, %v381
    %v389 = vcombine.low %v382, %v383
    %v391 = vunpack.c.l.s4 1966171168
    %v392 = vunpack.c.0.s8 %v391
    %v393 = vlaneseq
    %v394 = vshrl.u32 %v393, 7
    %v395 = vsub.s32 %v392, %v394
    %v396 = vrot.slane %v388, %v395
    %v398 = vunpack.c.l.s4 1966171168
    %v399 = vunpack.c.0.s8 %v398
    %v400 = vlaneseq
    %v401 = vshrl.u32 %v400, 7
    %v402 = vsub.s32 %v399, %v401
    %v403 = vrot.slane %v389, %v402
    %v404 = vcombine.low %v396, %v403
    %v406 = vunpack.c.l.s4 1966171168
    %v407 = vunpack.c.0.s8 %v406
    %v408 = vlaneseq
    %v409 = vshrl.u32 %v408, 7
    %v410 = vsub.s32 %v407, %v409
    %v411 = vrot.slane %v404, %v410
    %v413 = vmul.f32 %v301, %v411
    %v415 = vlaneseq
    %v416 = vshrl.u32 %v415, 7
    %v417 = vsub.s32 0, %v416
    %v418 = vrot.slane %v413, %v417
    %v419 = vlaneseq
    %v420 = vshrl.u32 %v419, 7
    %v421 = vsub.s32 1, %v420
    %v422 = vrot.slane %v413, %v421
    %v423 = vlaneseq
    %v424 = vshrl.u32 %v423, 7
    %v425 = vsub.s32 2, %v424
    %v426 = vrot.slane %v413, %v425
    %v427 = vlaneseq
    %v428 = vshrl.u32 %v427, 7
    %v429 = vsub.s32 3, %v428
    %v430 = vrot.slane %v413, %v429
    %v435 = vmul.f32 %v254, %v418
    %v436 = vmul.f32 %v256, %v422
    %v437 = vmul.f32 %v295, %v426
    %v438 = vmul.f32 %v297, %v430
    %v439 = vmul.f32 %v332, %v418
    %v440 = vmul.f32 %v333, %v422
    %v441 = vmul.f32 %v334, %v426
    %v442 = vmul.f32 %v335, %v430
    %v447 = vcombine.low %v439, %v440
    %v448 = vcombine.low %v441, %v442
    %v450 = vunpack.c.l.s4 1966171168
    %v451 = vunpack.c.0.s8 %v450
    %v452 = vlaneseq
    %v453 = vshrl.u32 %v452, 7
    %v454 = vsub.s32 %v451, %v453
    %v455 = vrot.slane %v447, %v454
    %v457 = vunpack.c.l.s4 1966171168
    %v458 = vunpack.c.0.s8 %v457
    %v459 = vlaneseq
    %v460 = vshrl.u32 %v459, 7
    %v461 = vsub.s32 %v458, %v460
    %v462 = vrot.slane %v448, %v461
    %v463 = vcombine.low %v455, %v462
    %v465 = vunpack.c.l.s4 1966171168
    %v466 = vunpack.c.0.s8 %v465
    %v467 = vlaneseq
    %v468 = vshrl.u32 %v467, 7
    %v469 = vsub.s32 %v466, %v468
    %v470 = vrot.slane %v463, %v469
    %v472 = vsub.f32 %v302, %v470
    %v474 = vlaneseq
    %v475 = vshrl.u32 %v474, 7
    %v476 = vsub.s32 0, %v475
    %v477 = vrot.slane %v472, %v476
    %v478 = vlaneseq
    %v479 = vshrl.u32 %v478, 7
    %v480 = vsub.s32 1, %v479
    %v481 = vrot.slane %v472, %v480
    %v482 = vlaneseq
    %v483 = vshrl.u32 %v482, 7
    %v484 = vsub.s32 2, %v483
    %v485 = vrot.slane %v472, %v484
    %v486 = vlaneseq
    %v487 = vshrl.u32 %v486, 7
    %v488 = vsub.s32 3, %v487
    %v489 = vrot.slane %v472, %v488
    %v494 = vadd.f32 %v435, %v477
    %v495 = vadd.f32 %v436, %v481
    %v496 = vadd.f32 %v437, %v485
    %v497 = vadd.f32 %v438, %v489
    %v498 = vmax.f32 %v494, 0.0
    %v499 = vmax.f32 %v495, 0.0
    %v500 = vmax.f32 %v496, 0.0
    %v501 = vmax.f32 %v497, 0.0
    %v503 = vrot.slane %v499, 4
    %v506 = vrot.slane %v501, 4
    %v508 = vsel %vm303, %v498, %v503
    %v509 = vsel %vm303, %v500, %v506
    %v510 = vpack.c.bf16 %v509, %v508
    %v511 = vld [vmem:[%s4] sm:$0xff]
    %v512 = vld [vmem:[%s4 + $0x8] sm:$0xf]
    %v513 = vld [vmem:[%s4 + $0xc] sm:$0xff]
    %v514 = vld [vmem:[%s4 + $0x14] sm:$0xf]
    %v515 = vld [vmem:[%s4 + $0x18] sm:$0xff]
    %v516 = vld [vmem:[%s4 + $0x20] sm:$0xf]
    %v517 = vld [vmem:[%s4 + $0x24] sm:$0xff]
    %v518 = vld [vmem:[%s4 + $0x2c] sm:$0xf]
    %v519 = vld [vmem:[%s4 + $0x30] sm:$0xff]
    %v520 = vld [vmem:[%s4 + $0x38] sm:$0xf]
    %v521 = vld [vmem:[%s4 + $0x3c] sm:$0xff]
    %v522 = vld [vmem:[%s4 + $0x44] sm:$0xf]
    %v523 = vld [vmem:[%s4 + $0x48] sm:$0xff]
    %v524 = vld [vmem:[%s4 + $0x50] sm:$0xf]
    %v525 = vld [vmem:[%s4 + $0x54] sm:$0xff]
    %v526 = vld [vmem:[%s4 + $0x5c] sm:$0xf]
    %v527 = vld [vmem:[%s4 + $0x60] sm:$0xff]
    %v528 = vld [vmem:[%s4 + $0x68] sm:$0xf]
    %v529 = vld [vmem:[%s4 + $0x6c] sm:$0xff]
    %v530 = vld [vmem:[%s4 + $0x74] sm:$0xf]
    %v531 = vld [vmem:[%s4 + $0x78] sm:$0xff]
    %v532 = vld [vmem:[%s4 + $0x80] sm:$0xf]
    %v533 = vld [vmem:[%s4 + $0x84] sm:$0xff]
    %v534 = vld [vmem:[%s4 + $0x8c] sm:$0xf]
    %v535 = vld [vmem:[%s4 + $0x90] sm:$0xff]
    %v536 = vld [vmem:[%s4 + $0x98] sm:$0xf]
    %v537 = vld [vmem:[%s4 + $0x9c] sm:$0xff]
    %v538 = vld [vmem:[%s4 + $0xa4] sm:$0xf]
    %v539 = vld [vmem:[%s4 + $0xa8] sm:$0xff]
    %v540 = vld [vmem:[%s4 + $0xb0] sm:$0xf]
    %v541 = vld [vmem:[%s4 + $0xb4] sm:$0xff]
    %v542 = vld [vmem:[%s4 + $0xbc] sm:$0xf]
    %v575 = vunpack.c.l.b16 %v511
    %v576 = vunpack.c.h.b16 %v511
    %v577 = vunpack.c.l.b16 %v512
    %v578 = vunpack.c.l.b16 %v513
    %v579 = vunpack.c.h.b16 %v513
    %v580 = vunpack.c.l.b16 %v514
    %v581 = vunpack.c.l.b16 %v515
    %v582 = vunpack.c.h.b16 %v515
    %v583 = vunpack.c.l.b16 %v516
    %v584 = vunpack.c.l.b16 %v517
    %v585 = vunpack.c.h.b16 %v517
    %v586 = vunpack.c.l.b16 %v518
    %v587 = vunpack.c.l.b16 %v519
    %v588 = vunpack.c.h.b16 %v519
    %v589 = vunpack.c.l.b16 %v520
    %v590 = vunpack.c.l.b16 %v521
    %v591 = vunpack.c.h.b16 %v521
    %v592 = vunpack.c.l.b16 %v522
    %v593 = vunpack.c.l.b16 %v523
    %v594 = vunpack.c.h.b16 %v523
    %v595 = vunpack.c.l.b16 %v524
    %v596 = vunpack.c.l.b16 %v525
    %v597 = vunpack.c.h.b16 %v525
    %v598 = vunpack.c.l.b16 %v526
    %v599 = vunpack.c.l.b16 %v527
    %v600 = vunpack.c.h.b16 %v527
    %v601 = vunpack.c.l.b16 %v528
    %v602 = vunpack.c.l.b16 %v529
    %v603 = vunpack.c.h.b16 %v529
    %v604 = vunpack.c.l.b16 %v530
    %v605 = vunpack.c.l.b16 %v531
    %v606 = vunpack.c.h.b16 %v531
    %v607 = vunpack.c.l.b16 %v532
    %v608 = vunpack.c.l.b16 %v533
    %v609 = vunpack.c.h.b16 %v533
    %v610 = vunpack.c.l.b16 %v534
    %v611 = vunpack.c.l.b16 %v535
    %v612 = vunpack.c.h.b16 %v535
    %v613 = vunpack.c.l.b16 %v536
    %v614 = vunpack.c.l.b16 %v537
    %v615 = vunpack.c.h.b16 %v537
    %v616 = vunpack.c.l.b16 %v538
    %v617 = vunpack.c.l.b16 %v539
    %v618 = vunpack.c.h.b16 %v539
    %v619 = vunpack.c.l.b16 %v540
    %v620 = vunpack.c.l.b16 %v541
    %v621 = vunpack.c.h.b16 %v541
    %v622 = vunpack.c.l.b16 %v542
    %v623 = vpack.c.b16 %v578, %v575
    %v624 = vpack.c.b16 %v579, %v576
    %v625 = vpack.c.b16 %v580, %v577
    %v626 = vpack.c.b16 %v584, %v581
    %v627 = vpack.c.b16 %v585, %v582
    %v628 = vpack.c.b16 %v586, %v583
    %v629 = vpack.c.b16 %v590, %v587
    %v630 = vpack.c.b16 %v591, %v588
    %v631 = vpack.c.b16 %v592, %v589
    %v632 = vpack.c.b16 %v596, %v593
    %v633 = vpack.c.b16 %v597, %v594
    %v634 = vpack.c.b16 %v598, %v595
    %v635 = vpack.c.b16 %v602, %v599
    %v636 = vpack.c.b16 %v603, %v600
    %v637 = vpack.c.b16 %v604, %v601
    %v638 = vpack.c.b16 %v608, %v605
    %v639 = vpack.c.b16 %v609, %v606
    %v640 = vpack.c.b16 %v610, %v607
    %v641 = vpack.c.b16 %v614, %v611
    %v642 = vpack.c.b16 %v615, %v612
    %v643 = vpack.c.b16 %v616, %v613
    %v644 = vpack.c.b16 %v620, %v617
    %v645 = vpack.c.b16 %v621, %v618
    %v646 = vpack.c.b16 %v622, %v619
    %671 = vmatprep.subr.bf16.mxu0 %v624
    %672 = vmatpush1.bf16.msra.mxu0 %v623
    %673 = vmatprep.subr.bf16.mxu0 %v627
    %674 = vmatpush1.bf16.msra.mxu0 %v626
    %675 = vmatprep.subr.bf16.mxu0 %v630
    %676 = vmatpush1.bf16.msra.mxu0 %v629
    %677 = vmatprep.subr.bf16.mxu0 %v633
    %678 = vmatpush1.bf16.msra.mxu0 %v632
    %679 = vmatprep.subr.bf16.mxu0 %v636
    %680 = vmatpush1.bf16.msra.mxu0 %v635
    %681 = vmatprep.subr.bf16.mxu0 %v639
    %682 = vmatpush1.bf16.msra.mxu0 %v638
    %683 = vmatprep.subr.bf16.mxu0 %v642
    %684 = vmatpush1.bf16.msra.mxu0 %v641
    %685 = vmatprep.subr.bf16.mxu0 %v645
    %686 = vmatpush1.bf16.msra.mxu0 %v644
    %687 = vmatprep.subr.bf16.mxu0 0
    %688 = vmatpush1.bf16.msra.mxu0 0
    %689 = vmatprep.subr.bf16.mxu0 0
    %690 = vmatpush1.bf16.msra.mxu0 0
    %691 = vmatprep.subr.bf16.mxu0 0
    %692 = vmatpush1.bf16.msra.mxu0 0
    %693 = vmatprep.subr.bf16.mxu0 0
    %694 = vmatpush1.bf16.msra.mxu0 0
    %695 = vmatprep.subr.bf16.mxu0 0
    %696 = vmatpush1.bf16.msra.mxu0 0
    %697 = vmatprep.subr.bf16.mxu0 0
    %698 = vmatpush1.bf16.msra.mxu0 0
    %699 = vmatprep.subr.bf16.mxu0 0
    %700 = vmatpush1.bf16.msra.mxu0 0
    %701 = vmatprep.subr.bf16.mxu0 0
    %702 = vmatpush1.bf16.msra.mxu0 0
    %703 = vmatprep.mubr.bf16.mxu0 0
    %704 = vmatmul.mubr.bf16.gmra.mrb[0].mxu0 %v510
    %v705 = vpop.f32.mrb[0].mxu0
    %v706 = vadd.f32 0.0, %v705
    %v707 = vpop.f32.mrb[0].mxu0
    %v708 = vadd.f32 0.0, %v707
    %v709 = vpop.f32.mrb[0].mxu0
    %v710 = vadd.f32 0.0, %v709
    %v711 = vpop.f32.mrb[0].mxu0
    %v712 = vadd.f32 0.0, %v711
    %713 = vdwg.mxu0
    %714 = vmatprep.subr.bf16.mxu0 0
    %715 = vmatpush1.bf16.msra.mxu0 %v625
    %716 = vmatprep.subr.bf16.mxu0 0
    %717 = vmatpush1.bf16.msra.mxu0 %v628
    %718 = vmatprep.subr.bf16.mxu0 0
    %719 = vmatpush1.bf16.msra.mxu0 %v631
    %720 = vmatprep.subr.bf16.mxu0 0
    %721 = vmatpush1.bf16.msra.mxu0 %v634
    %722 = vmatprep.subr.bf16.mxu0 0
    %723 = vmatpush1.bf16.msra.mxu0 %v637
    %724 = vmatprep.subr.bf16.mxu0 0
    %725 = vmatpush1.bf16.msra.mxu0 %v640
    %726 = vmatprep.subr.bf16.mxu0 0
    %727 = vmatpush1.bf16.msra.mxu0 %v643
    %728 = vmatprep.subr.bf16.mxu0 0
    %729 = vmatpush1.bf16.msra.mxu0 %v646
    %730 = vmatprep.subr.bf16.mxu0 0
    %731 = vmatpush1.bf16.msra.mxu0 0
    %732 = vmatprep.subr.bf16.mxu0 0
    %733 = vmatpush1.bf16.msra.mxu0 0
    %734 = vmatprep.subr.bf16.mxu0 0
    %735 = vmatpush1.bf16.msra.mxu0 0
    %736 = vmatprep.subr.bf16.mxu0 0
    %737 = vmatpush1.bf16.msra.mxu0 0
    %738 = vmatprep.subr.bf16.mxu0 0
    %739 = vmatpush1.bf16.msra.mxu0 0
    %740 = vmatprep.subr.bf16.mxu0 0
    %741 = vmatpush1.bf16.msra.mxu0 0
    %742 = vmatprep.subr.bf16.mxu0 0
    %743 = vmatpush1.bf16.msra.mxu0 0
    %744 = vmatprep.subr.bf16.mxu0 0
    %745 = vmatpush1.bf16.msra.mxu0 0
    %746 = vmatprep.mubr.bf16.mxu0 0
    %747 = vmatmul.mubr.bf16.gmra.mrb[0].mxu0 %v510
    %v748 = vpop.f32.mrb[0].mxu0
    %v749 = vadd.f32 0.0, %v748
    %v750 = vpop.f32.mrb[0].mxu0
    %v751 = vpop.f32.mrb[0].mxu0
    %v752 = vadd.f32 0.0, %v751
    %v753 = vpop.f32.mrb[0].mxu0
    %754 = vdwg.mxu0
    %757 = vrot.lane.b32.xlu0 %v706, 64
    %v758 = vpop.permute.xlu0 %757
    %759 = vrot.lane.b32.xlu0 %v710, 64
    %v760 = vpop.permute.xlu0 %759
    %765 = vrot.lane.b32.xlu0 %v708, 64
    %v766 = vpop.permute.xlu0 %765
    %767 = vrot.lane.b32.xlu0 %v712, 64
    %v768 = vpop.permute.xlu0 %767
    %v771 = vld [vmem:[#allocation6] sm:$0xff]
    %v772 = vld [vmem:[#allocation6 + $0x8] sm:$0xff]
    %v773 = vld [vmem:[#allocation6 + $0x10] sm:$0xff]
    %v774 = vld [vmem:[#allocation6 + $0x18] sm:$0xff]
    %vm775 = vcmask 654336
    %v777 = vsel %vm775, %v771, 0
    %v780 = vsel %vm775, %v772, 0
    %v783 = vsel %vm775, %v773, 0
    %v786 = vsel %vm775, %v774, 0
    %788 = vmatprep.subr.mxu0 0.0
    %789 = vmatpush1.msra.mxu0 %v706
    %790 = vmatprep.subr.mxu0 0.0
    %791 = vmatpush1.msra.mxu0 %v710
    %792 = vmatprep.subr.mxu0 0.0
    %793 = vmatpush1.msra.mxu0 %v758
    %794 = vmatprep.subr.mxu0 0.0
    %795 = vmatpush1.msra.mxu0 %v760
    %796 = vmatprep.subr.mxu0 0.0
    %797 = vmatpush1.msra.mxu0 %v708
    %798 = vmatprep.subr.mxu0 0.0
    %799 = vmatpush1.msra.mxu0 %v712
    %800 = vmatprep.subr.mxu0 0.0
    %801 = vmatpush1.msra.mxu0 %v766
    %802 = vmatprep.subr.mxu0 0.0
    %803 = vmatpush1.msra.mxu0 %v768
    %804 = vmatprep.subr.mxu0 0.0
    %805 = vmatpush1.msra.mxu0 %v749
    %806 = vmatprep.subr.mxu0 0.0
    %807 = vmatpush1.msra.mxu0 %v752
    %808 = vmatprep.subr.mxu0 0.0
    %809 = vmatpush1.msra.mxu0 0.0
    %810 = vmatprep.subr.mxu0 0.0
    %811 = vmatpush1.msra.mxu0 0.0
    %812 = vmatprep.subr.mxu0 0.0
    %813 = vmatpush1.msra.mxu0 0.0
    %814 = vmatprep.subr.mxu0 0.0
    %815 = vmatpush1.msra.mxu0 0.0
    %816 = vmatprep.subr.mxu0 0.0
    %817 = vmatpush1.msra.mxu0 0.0
    %818 = vmatprep.subr.mxu0 0.0
    %819 = vmatpush1.msra.mxu0 0.0
    %820 = vmatprep.subr.mxu0 0.0
    %821 = vmatpush1.msra.mxu0 0.0
    %822 = vmatprep.subr.mxu0 0.0
    %823 = vmatpush1.msra.mxu0 0.0
    %824 = vmatprep.subr.mxu0 0.0
    %825 = vmatpush1.msra.mxu0 0.0
    %826 = vmatprep.subr.mxu0 0.0
    %827 = vmatpush1.msra.mxu0 0.0
    %828 = vmatprep.subr.mxu0 0.0
    %829 = vmatpush1.msra.mxu0 0.0
    %830 = vmatprep.subr.mxu0 0.0
    %831 = vmatpush1.msra.mxu0 0.0
    %832 = vmatprep.subr.mxu0 0.0
    %833 = vmatpush1.msra.mxu0 0.0
    %834 = vmatprep.subr.mxu0 0.0
    %835 = vmatpush1.msra.mxu0 0.0
    %836 = vmatprep.subr.mxu0 0.0
    %837 = vmatpush1.msra.mxu0 0.0
    %838 = vmatprep.subr.mxu0 0.0
    %839 = vmatpush1.msra.mxu0 0.0
    %840 = vmatprep.subr.mxu0 0.0
    %841 = vmatpush1.msra.mxu0 0.0
    %842 = vmatprep.subr.mxu0 0.0
    %843 = vmatpush1.msra.mxu0 0.0
    %844 = vmatprep.subr.mxu0 0.0
    %845 = vmatpush1.msra.mxu0 0.0
    %846 = vmatprep.subr.mxu0 0.0
    %847 = vmatpush1.msra.mxu0 0.0
    %848 = vmatprep.subr.mxu0 0.0
    %849 = vmatpush1.msra.mxu0 0.0
    %850 = vmatprep.subr.mxu0 0.0
    %851 = vmatpush1.msra.mxu0 0.0
    %852 = vmatprep.mubr.f32.mxu0 0.0
    %853 = vmatmul.mubr.f32.gmra.mrb[0].mxu0 %v777
    %v854 = vpop.f32.mrb[0].mxu0
    %v855 = vadd.f32 0.0, %v854
    %v856 = vpop.f32.mrb[0].mxu0
    %857 = vmatprep.mubr.f32.mxu0 0.0
    %858 = vmatmul.mubr.f32.gmra.mrb[0].mxu0 %v780
    %v859 = vpop.f32.mrb[0].mxu0
    %v860 = vadd.f32 0.0, %v859
    %v861 = vpop.f32.mrb[0].mxu0
    %862 = vmatprep.mubr.f32.mxu0 0.0
    %863 = vmatmul.mubr.f32.gmra.mrb[0].mxu0 %v783
    %v864 = vpop.f32.mrb[0].mxu0
    %v865 = vadd.f32 0.0, %v864
    %v866 = vpop.f32.mrb[0].mxu0
    %867 = vmatprep.mubr.f32.mxu0 0.0
    %868 = vmatmul.mubr.f32.gmra.mrb[0].mxu0 %v786
    %v869 = vpop.f32.mrb[0].mxu0
    %v870 = vadd.f32 0.0, %v869
    %v871 = vpop.f32.mrb[0].mxu0
    %872 = vdwg.mxu0
    %v873 = vld [vmem:[#allocation7] sm:$0x1]
    %v874 = vld [vmem:[%s7] sm:$0x1]
    %vm875 = vcmask 523264
    %v876 = vsel %vm875, %v855, 0.0
    %v877 = vsel %vm875, %v860, 0.0
    %v878 = vadd.f32 %v876, %v877
    %v879 = vsel %vm875, %v865, 0.0
    %v880 = vadd.f32 %v878, %v879
    %v881 = vsel %vm875, %v870, 0.0
    %v882 = vadd.f32 %v880, %v881
    %v883 = vrot.slane %v882, 4
    %v884 = vadd.f32 %v882, %v883
    %v885 = vrot.slane %v884, 2
    %v886 = vadd.f32 %v884, %v885
    %v887 = vrot.slane %v886, 1
    %v888 = vadd.f32 %v886, %v887
    %v889 = vmul.f32 %v888, 0.03125
    %v890 = vsub.f32 %v855, %v889
    %v891 = vsub.f32 %v860, %v889
    %v892 = vsub.f32 %v865, %v889
    %v893 = vsub.f32 %v870, %v889
    %v894 = vmul.f32 %v890, %v890
    %v895 = vmul.f32 %v891, %v891
    %v896 = vmul.f32 %v892, %v892
    %v897 = vmul.f32 %v893, %v893
    %v898 = vsel %vm875, %v894, 0.0
    %v899 = vsel %vm875, %v895, 0.0
    %v900 = vadd.f32 %v898, %v899
    %v901 = vsel %vm875, %v896, 0.0
    %v902 = vadd.f32 %v900, %v901
    %v903 = vsel %vm875, %v897, 0.0
    %v904 = vadd.f32 %v902, %v903
    %v905 = vrot.slane %v904, 4
    %v906 = vadd.f32 %v904, %v905
    %v907 = vrot.slane %v906, 2
    %v908 = vadd.f32 %v906, %v907
    %v909 = vrot.slane %v908, 1
    %v910 = vadd.f32 %v908, %v909
    %v911 = vmul.f32 %v910, 0.03125
    %v912 = vadd.f32 %v911, 1e-05
    %v913 = vrsqrt.pop %v912
    %v914 = vmul.f32 %v873, %v913
    %v916 = vlaneseq
    %v917 = vshrl.u32 %v916, 7
    %v918 = vsub.s32 0, %v917
    %v919 = vrot.slane %v914, %v918
    %v921 = vmul.f32 %v855, %v919
    %v922 = vmul.f32 %v860, %v919
    %v923 = vmul.f32 %v865, %v919
    %v924 = vmul.f32 %v870, %v919
    %v925 = vmul.f32 %v889, %v914
    %v926 = vsub.f32 %v874, %v925
    %v928 = vlaneseq
    %v929 = vshrl.u32 %v928, 7
    %v930 = vsub.s32 0, %v929
    %v931 = vrot.slane %v926, %v930
    %v933 = vadd.f32 %v921, %v931
    %v934 = vadd.f32 %v922, %v931
    %v935 = vadd.f32 %v923, %v931
    %v936 = vadd.f32 %v924, %v931
    %v937 = vmax.f32 %v933, 0.0
    %v938 = vmax.f32 %v934, 0.0
    %v939 = vmax.f32 %v935, 0.0
    %v940 = vmax.f32 %v936, 0.0
    %v941 = vpack.c.bf16 %v938, %v937
    %v942 = vpack.c.bf16 %v940, %v939
    %v943 = vld [vmem:[%s8] sm:$0xff]
    %v944 = vld [vmem:[%s8 + $0x8] sm:$0xff]
    %v945 = vld [vmem:[%s8 + $0x10] sm:$0xff]
    %v946 = vld [vmem:[%s8 + $0x18] sm:$0xff]
    %v947 = vld [vmem:[%s8 + $0x20] sm:$0xff]
    %v948 = vld [vmem:[%s8 + $0x28] sm:$0xff]
    %v949 = vld [vmem:[%s8 + $0x30] sm:$0xff]
    %v950 = vld [vmem:[%s8 + $0x38] sm:$0xff]
    %v959 = vunpack.c.l.b16 %v943
    %v960 = vunpack.c.h.b16 %v943
    %v961 = vunpack.c.l.b16 %v944
    %v962 = vunpack.c.h.b16 %v944
    %v963 = vunpack.c.l.b16 %v945
    %v964 = vunpack.c.h.b16 %v945
    %v965 = vunpack.c.l.b16 %v946
    %v966 = vunpack.c.h.b16 %v946
    %v967 = vunpack.c.l.b16 %v947
    %v968 = vunpack.c.h.b16 %v947
    %v969 = vunpack.c.l.b16 %v948
    %v970 = vunpack.c.h.b16 %v948
    %v971 = vunpack.c.l.b16 %v949
    %v972 = vunpack.c.h.b16 %v949
    %v973 = vunpack.c.l.b16 %v950
    %v974 = vunpack.c.h.b16 %v950
    %v975 = vpack.c.b16 %v961, %v959
    %v976 = vpack.c.b16 %v962, %v960
    %v977 = vpack.c.b16 %v965, %v963
    %v978 = vpack.c.b16 %v966, %v964
    %v979 = vpack.c.b16 %v969, %v967
    %v980 = vpack.c.b16 %v970, %v968
    %v981 = vpack.c.b16 %v973, %v971
    %v982 = vpack.c.b16 %v974, %v972
    %v992 = vsel %vm875, %v941, 0
    %v995 = vsel %vm875, %v942, 0
    %997 = vmatprep.subr.bf16.mxu0 %v976
    %998 = vmatpush1.bf16.msra.mxu0 %v975
    %999 = vmatprep.subr.bf16.mxu0 %v978
    %1000 = vmatpush1.bf16.msra.mxu0 %v977
    %1001 = vmatprep.subr.bf16.mxu0 %v980
    %1002 = vmatpush1.bf16.msra.mxu0 %v979
    %1003 = vmatprep.subr.bf16.mxu0 %v982
    %1004 = vmatpush1.bf16.msra.mxu0 %v981
    %1005 = vmatprep.subr.bf16.mxu0 0
    %1006 = vmatpush1.bf16.msra.mxu0 0
    %1007 = vmatprep.subr.bf16.mxu0 0
    %1008 = vmatpush1.bf16.msra.mxu0 0
    %1009 = vmatprep.subr.bf16.mxu0 0
    %1010 = vmatpush1.bf16.msra.mxu0 0
    %1011 = vmatprep.subr.bf16.mxu0 0
    %1012 = vmatpush1.bf16.msra.mxu0 0
    %1013 = vmatprep.subr.bf16.mxu0 0
    %1014 = vmatpush1.bf16.msra.mxu0 0
    %1015 = vmatprep.subr.bf16.mxu0 0
    %1016 = vmatpush1.bf16.msra.mxu0 0
    %1017 = vmatprep.subr.bf16.mxu0 0
    %1018 = vmatpush1.bf16.msra.mxu0 0
    %1019 = vmatprep.subr.bf16.mxu0 0
    %1020 = vmatpush1.bf16.msra.mxu0 0
    %1021 = vmatprep.subr.bf16.mxu0 0
    %1022 = vmatpush1.bf16.msra.mxu0 0
    %1023 = vmatprep.subr.bf16.mxu0 0
    %1024 = vmatpush1.bf16.msra.mxu0 0
    %1025 = vmatprep.subr.bf16.mxu0 0
    %1026 = vmatpush1.bf16.msra.mxu0 0
    %1027 = vmatprep.subr.bf16.mxu0 0
    %1028 = vmatpush1.bf16.msra.mxu0 0
    %1029 = vmatprep.mubr.bf16.mxu0 0
    %1030 = vmatmul.mubr.bf16.gmra.mrb[0].mxu0 %v992
    %v1031 = vpop.f32.mrb[0].mxu0
    %v1032 = vadd.f32 0.0, %v1031
    %v1033 = vpop.f32.mrb[0].mxu0
    %v1034 = vadd.f32 0.0, %v1033
    %v1035 = vpop.f32.mrb[0].mxu0
    %v1036 = vadd.f32 0.0, %v1035
    %v1037 = vpop.f32.mrb[0].mxu0
    %v1038 = vadd.f32 0.0, %v1037
    %1039 = vmatprep.mubr.bf16.mxu0 0
    %1040 = vmatmul.mubr.bf16.gmra.mrb[0].mxu0 %v995
    %v1041 = vpop.f32.mrb[0].mxu0
    %v1042 = vadd.f32 0.0, %v1041
    %v1043 = vpop.f32.mrb[0].mxu0
    %v1044 = vadd.f32 0.0, %v1043
    %v1045 = vpop.f32.mrb[0].mxu0
    %v1046 = vadd.f32 0.0, %v1045
    %v1047 = vpop.f32.mrb[0].mxu0
    %v1048 = vadd.f32 0.0, %v1047
    %1049 = vdwg.mxu0
    %1054 = vrot.lane.b32.xlu0 %v1032, 96
    %v1055 = vpop.permute.xlu0 %1054
    %1056 = vrot.lane.b32.xlu0 %v1036, 96
    %v1057 = vpop.permute.xlu0 %1056
    %1058 = vrot.lane.b32.xlu0 %v1042, 96
    %v1059 = vpop.permute.xlu0 %1058
    %1060 = vrot.lane.b32.xlu0 %v1046, 96
    %v1061 = vpop.permute.xlu0 %1060
    %1066 = vrot.lane.b32.xlu0 %v1032, 64
    %v1067 = vpop.permute.xlu0 %1066
    %1068 = vrot.lane.b32.xlu0 %v1036, 64
    %v1069 = vpop.permute.xlu0 %1068
    %1070 = vrot.lane.b32.xlu0 %v1042, 64
    %v1071 = vpop.permute.xlu0 %1070
    %1072 = vrot.lane.b32.xlu0 %v1046, 64
    %v1073 = vpop.permute.xlu0 %1072
    %1078 = vrot.lane.b32.xlu0 %v1032, 32
    %v1079 = vpop.permute.xlu0 %1078
    %1080 = vrot.lane.b32.xlu0 %v1036, 32
    %v1081 = vpop.permute.xlu0 %1080
    %1082 = vrot.lane.b32.xlu0 %v1042, 32
    %v1083 = vpop.permute.xlu0 %1082
    %1084 = vrot.lane.b32.xlu0 %v1046, 32
    %v1085 = vpop.permute.xlu0 %1084
    %v1090 = vld [vmem:[%s9] sm:$0xff]
    %v1091 = vld [vmem:[%s9 + $0x8] sm:$0xff]
    %v1092 = vld [vmem:[%s9 + $0x10] sm:$0xff]
    %v1093 = vld [vmem:[%s9 + $0x18] sm:$0xff]
    %v1094 = vld [vmem:[%s9 + $0x20] sm:$0xff]
    %v1095 = vld [vmem:[%s9 + $0x28] sm:$0xff]
    %v1096 = vld [vmem:[%s9 + $0x30] sm:$0xff]
    %v1097 = vld [vmem:[%s9 + $0x38] sm:$0xff]
    %v1098 = vld [vmem:[%s9 + $0x40] sm:$0xff]
    %v1099 = vld [vmem:[%s9 + $0x48] sm:$0xff]
    %v1100 = vld [vmem:[%s9 + $0x50] sm:$0xff]
    %v1101 = vld [vmem:[%s9 + $0x58] sm:$0xff]
    %v1102 = vld [vmem:[%s9 + $0x60] sm:$0xff]
    %v1103 = vld [vmem:[%s9 + $0x68] sm:$0xff]
    %v1104 = vld [vmem:[%s9 + $0x70] sm:$0xff]
    %v1105 = vld [vmem:[%s9 + $0x78] sm:$0xff]
    %v1107 = vsel %vm215, %v1091, 0
    %v1110 = vsel %vm215, %v1093, 0
    %v1113 = vsel %vm215, %v1095, 0
    %v1116 = vsel %vm215, %v1097, 0
    %v1119 = vsel %vm215, %v1099, 0
    %v1122 = vsel %vm215, %v1101, 0
    %v1125 = vsel %vm215, %v1103, 0
    %v1128 = vsel %vm215, %v1105, 0
    %1130 = vmatprep.subr.mxu0 0.0
    %1131 = vmatpush1.msra.mxu0 %v1032
    %1132 = vmatprep.subr.mxu0 0.0
    %1133 = vmatpush1.msra.mxu0 %v1036
    %1134 = vmatprep.subr.mxu0 0.0
    %1135 = vmatpush1.msra.mxu0 %v1042
    %1136 = vmatprep.subr.mxu0 0.0
    %1137 = vmatpush1.msra.mxu0 %v1046
    %1138 = vmatprep.subr.mxu0 0.0
    %1139 = vmatpush1.msra.mxu0 %v1055
    %1140 = vmatprep.subr.mxu0 0.0
    %1141 = vmatpush1.msra.mxu0 %v1057
    %1142 = vmatprep.subr.mxu0 0.0
    %1143 = vmatpush1.msra.mxu0 %v1059
    %1144 = vmatprep.subr.mxu0 0.0
    %1145 = vmatpush1.msra.mxu0 %v1061
    %1146 = vmatprep.subr.mxu0 0.0
    %1147 = vmatpush1.msra.mxu0 %v1067
    %1148 = vmatprep.subr.mxu0 0.0
    %1149 = vmatpush1.msra.mxu0 %v1069
    %1150 = vmatprep.subr.mxu0 0.0
    %1151 = vmatpush1.msra.mxu0 %v1071
    %1152 = vmatprep.subr.mxu0 0.0
    %1153 = vmatpush1.msra.mxu0 %v1073
    %1154 = vmatprep.subr.mxu0 0.0
    %1155 = vmatpush1.msra.mxu0 %v1079
    %1156 = vmatprep.subr.mxu0 0.0
    %1157 = vmatpush1.msra.mxu0 %v1081
    %1158 = vmatprep.subr.mxu0 0.0
    %1159 = vmatpush1.msra.mxu0 %v1083
    %1160 = vmatprep.subr.mxu0 0.0
    %1161 = vmatpush1.msra.mxu0 %v1085
    %1162 = vmatprep.subr.mxu0 0.0
    %1163 = vmatpush1.msra.mxu0 %v1034
    %1164 = vmatprep.subr.mxu0 0.0
    %1165 = vmatpush1.msra.mxu0 %v1038
    %1166 = vmatprep.subr.mxu0 0.0
    %1167 = vmatpush1.msra.mxu0 %v1044
    %1168 = vmatprep.subr.mxu0 0.0
    %1169 = vmatpush1.msra.mxu0 %v1048
    %1170 = vmatprep.subr.mxu0 0.0
    %1171 = vmatpush1.msra.mxu0 0.0
    %1172 = vmatprep.subr.mxu0 0.0
    %1173 = vmatpush1.msra.mxu0 0.0
    %1174 = vmatprep.subr.mxu0 0.0
    %1175 = vmatpush1.msra.mxu0 0.0
    %1176 = vmatprep.subr.mxu0 0.0
    %1177 = vmatpush1.msra.mxu0 0.0
    %1178 = vmatprep.subr.mxu0 0.0
    %1179 = vmatpush1.msra.mxu0 0.0
    %1180 = vmatprep.subr.mxu0 0.0
    %1181 = vmatpush1.msra.mxu0 0.0
    %1182 = vmatprep.subr.mxu0 0.0
    %1183 = vmatpush1.msra.mxu0 0.0
    %1184 = vmatprep.subr.mxu0 0.0
    %1185 = vmatpush1.msra.mxu0 0.0
    %1186 = vmatprep.subr.mxu0 0.0
    %1187 = vmatpush1.msra.mxu0 0.0
    %1188 = vmatprep.subr.mxu0 0.0
    %1189 = vmatpush1.msra.mxu0 0.0
    %1190 = vmatprep.subr.mxu0 0.0
    %1191 = vmatpush1.msra.mxu0 0.0
    %1192 = vmatprep.subr.mxu0 0.0
    %1193 = vmatpush1.msra.mxu0 0.0
    %1194 = vmatprep.mubr.f32.mxu0 %v1107
    %1195 = vmatmul.mubr.f32.gmra.mrb[0].mxu0 %v1090
    %v1196 = vpop.f32.mrb[0].mxu0
    %v1197 = vadd.f32 0.0, %v1196
    %v1198 = vpop.f32.mrb[0].mxu0
    %1199 = vmatprep.mubr.f32.mxu0 %v1110
    %1200 = vmatmul.mubr.f32.gmra.mrb[0].mxu0 %v1092
    %v1201 = vpop.f32.mrb[0].mxu0
    %v1202 = vadd.f32 0.0, %v1201
    %v1203 = vpop.f32.mrb[0].mxu0
    %1204 = vmatprep.mubr.f32.mxu0 %v1113
    %1205 = vmatmul.mubr.f32.gmra.mrb[0].mxu0 %v1094
    %v1206 = vpop.f32.mrb[0].mxu0
    %v1207 = vadd.f32 0.0, %v1206
    %v1208 = vpop.f32.mrb[0].mxu0
    %1209 = vmatprep.mubr.f32.mxu0 %v1116
    %1210 = vmatmul.mubr.f32.gmra.mrb[0].mxu0 %v1096
    %v1211 = vpop.f32.mrb[0].mxu0
    %v1212 = vadd.f32 0.0, %v1211
    %v1213 = vpop.f32.mrb[0].mxu0
    %1214 = vmatprep.mubr.f32.mxu0 %v1119
    %1215 = vmatmul.mubr.f32.gmra.mrb[0].mxu0 %v1098
    %v1216 = vpop.f32.mrb[0].mxu0
    %v1217 = vadd.f32 0.0, %v1216
    %v1218 = vpop.f32.mrb[0].mxu0
    %1219 = vmatprep.mubr.f32.mxu0 %v1122
    %1220 = vmatmul.mubr.f32.gmra.mrb[0].mxu0 %v1100
    %v1221 = vpop.f32.mrb[0].mxu0
    %v1222 = vadd.f32 0.0, %v1221
    %v1223 = vpop.f32.mrb[0].mxu0
    %1224 = vmatprep.mubr.f32.mxu0 %v1125
    %1225 = vmatmul.mubr.f32.gmra.mrb[0].mxu0 %v1102
    %v1226 = vpop.f32.mrb[0].mxu0
    %v1227 = vadd.f32 0.0, %v1226
    %v1228 = vpop.f32.mrb[0].mxu0
    %1229 = vmatprep.mubr.f32.mxu0 %v1128
    %1230 = vmatmul.mubr.f32.gmra.mrb[0].mxu0 %v1104
    %v1231 = vpop.f32.mrb[0].mxu0
    %v1232 = vadd.f32 0.0, %v1231
    %v1233 = vpop.f32.mrb[0].mxu0
    %1234 = vdwg.mxu0
    %v1235 = vld [vmem:[#allocation9] sm:$0x1]
    %v1236 = vld [vmem:[%s11] sm:$0x1]
    %v1237 = vsel %vm215, %v1197, 0.0
    %v1238 = vsel %vm215, %v1202, 0.0
    %v1239 = vadd.f32 %v1237, %v1238
    %v1240 = vsel %vm215, %v1207, 0.0
    %v1241 = vadd.f32 %v1239, %v1240
    %v1242 = vsel %vm215, %v1212, 0.0
    %v1243 = vadd.f32 %v1241, %v1242
    %v1244 = vsel %vm215, %v1217, 0.0
    %v1245 = vadd.f32 %v1243, %v1244
    %v1246 = vsel %vm215, %v1222, 0.0
    %v1247 = vadd.f32 %v1245, %v1246
    %v1248 = vsel %vm215, %v1227, 0.0
    %v1249 = vadd.f32 %v1247, %v1248
    %v1250 = vsel %vm215, %v1232, 0.0
    %v1251 = vadd.f32 %v1249, %v1250
    %v1252 = vrot.slane %v1251, 4
    %v1253 = vadd.f32 %v1251, %v1252
    %v1254 = vrot.slane %v1253, 2
    %v1255 = vadd.f32 %v1253, %v1254
    %v1256 = vrot.slane %v1255, 1
    %v1257 = vadd.f32 %v1255, %v1256
    %v1258 = vmul.f32 %v1257, 0.015625
    %v1259 = vsub.f32 %v1197, %v1258
    %v1260 = vsub.f32 %v1202, %v1258
    %v1261 = vsub.f32 %v1207, %v1258
    %v1262 = vsub.f32 %v1212, %v1258
    %v1263 = vsub.f32 %v1217, %v1258
    %v1264 = vsub.f32 %v1222, %v1258
    %v1265 = vsub.f32 %v1227, %v1258
    %v1266 = vsub.f32 %v1232, %v1258
    %v1267 = vmul.f32 %v1259, %v1259
    %v1268 = vmul.f32 %v1260, %v1260
    %v1269 = vmul.f32 %v1261, %v1261
    %v1270 = vmul.f32 %v1262, %v1262
    %v1271 = vmul.f32 %v1263, %v1263
    %v1272 = vmul.f32 %v1264, %v1264
    %v1273 = vmul.f32 %v1265, %v1265
    %v1274 = vmul.f32 %v1266, %v1266
    %v1275 = vsel %vm215, %v1267, 0.0
    %v1276 = vsel %vm215, %v1268, 0.0
    %v1277 = vadd.f32 %v1275, %v1276
    %v1278 = vsel %vm215, %v1269, 0.0
    %v1279 = vadd.f32 %v1277, %v1278
    %v1280 = vsel %vm215, %v1270, 0.0
    %v1281 = vadd.f32 %v1279, %v1280
    %v1282 = vsel %vm215, %v1271, 0.0
    %v1283 = vadd.f32 %v1281, %v1282
    %v1284 = vsel %vm215, %v1272, 0.0
    %v1285 = vadd.f32 %v1283, %v1284
    %v1286 = vsel %vm215, %v1273, 0.0
    %v1287 = vadd.f32 %v1285, %v1286
    %v1288 = vsel %vm215, %v1274, 0.0
    %v1289 = vadd.f32 %v1287, %v1288
    %v1290 = vrot.slane %v1289, 4
    %v1291 = vadd.f32 %v1289, %v1290
    %v1292 = vrot.slane %v1291, 2
    %v1293 = vadd.f32 %v1291, %v1292
    %v1294 = vrot.slane %v1293, 1
    %v1295 = vadd.f32 %v1293, %v1294
    %v1296 = vmul.f32 %v1295, 0.015625
    %v1297 = vadd.f32 %v1296, 1e-05
    %v1298 = vrsqrt.pop %v1297
    %v1299 = vmul.f32 %v1235, %v1298
    %v1301 = vlaneseq
    %v1302 = vshrl.u32 %v1301, 7
    %v1303 = vsub.s32 0, %v1302
    %v1304 = vrot.slane %v1299, %v1303
    %v1306 = vmul.f32 %v1197, %v1304
    %v1307 = vmul.f32 %v1202, %v1304
    %v1308 = vmul.f32 %v1207, %v1304
    %v1309 = vmul.f32 %v1212, %v1304
    %v1310 = vmul.f32 %v1217, %v1304
    %v1311 = vmul.f32 %v1222, %v1304
    %v1312 = vmul.f32 %v1227, %v1304
    %v1313 = vmul.f32 %v1232, %v1304
    %v1314 = vmul.f32 %v1258, %v1299
    %v1315 = vsub.f32 %v1236, %v1314
    %v1317 = vlaneseq
    %v1318 = vshrl.u32 %v1317, 7
    %v1319 = vsub.s32 0, %v1318
    %v1320 = vrot.slane %v1315, %v1319
    %v1322 = vadd.f32 %v1306, %v1320
    %v1323 = vadd.f32 %v1307, %v1320
    %v1324 = vadd.f32 %v1308, %v1320
    %v1325 = vadd.f32 %v1309, %v1320
    %v1326 = vadd.f32 %v1310, %v1320
    %v1327 = vadd.f32 %v1311, %v1320
    %v1328 = vadd.f32 %v1312, %v1320
    %v1329 = vadd.f32 %v1313, %v1320
    %v1330 = vmax.f32 %v1322, 0.0
    %v1331 = vmax.f32 %v1323, 0.0
    %v1332 = vmax.f32 %v1324, 0.0
    %v1333 = vmax.f32 %v1325, 0.0
    %v1334 = vmax.f32 %v1326, 0.0
    %v1335 = vmax.f32 %v1327, 0.0
    %v1336 = vmax.f32 %v1328, 0.0
    %v1337 = vmax.f32 %v1329, 0.0
    %v1338 = vpack.c.bf16 %v1331, %v1330
    %v1339 = vpack.c.bf16 %v1333, %v1332
    %v1340 = vpack.c.bf16 %v1335, %v1334
    %v1341 = vpack.c.bf16 %v1337, %v1336
    %v1342 = vld [vmem:[#allocation10] sm:$0xf]
    %v1343 = vld [vmem:[#allocation10 + $0x4] sm:$0xf]
    %v1344 = vld [vmem:[#allocation10 + $0x8] sm:$0xf]
    %v1345 = vld [vmem:[#allocation10 + $0xc] sm:$0xf]
    %v1350 = vunpack.c.l.b16 %v1342
    %v1351 = vunpack.c.l.b16 %v1343
    %v1352 = vunpack.c.l.b16 %v1344
    %v1353 = vunpack.c.l.b16 %v1345
    %v1354 = vpack.c.b16 %v1351, %v1350
    %v1355 = vpack.c.b16 %v1353, %v1352
    %v1359 = vsel %vm215, %v1338, 0
    %v1362 = vsel %vm215, %v1339, 0
    %v1365 = vsel %vm215, %v1340, 0
    %v1368 = vsel %vm215, %v1341, 0
    %1370 = vmatprep.subr.bf16.mxu0 0
    %1371 = vmatpush1.bf16.msra.mxu0 %v1354
    %1372 = vmatprep.subr.bf16.mxu0 0
    %1373 = vmatpush1.bf16.msra.mxu0 %v1355
    %1374 = vmatprep.subr.bf16.mxu0 0
    %1375 = vmatpush1.bf16.msra.mxu0 0
    %1376 = vmatprep.subr.bf16.mxu0 0
    %1377 = vmatpush1.bf16.msra.mxu0 0
    %1378 = vmatprep.subr.bf16.mxu0 0
    %1379 = vmatpush1.bf16.msra.mxu0 0
    %1380 = vmatprep.subr.bf16.mxu0 0
    %1381 = vmatpush1.bf16.msra.mxu0 0
    %1382 = vmatprep.subr.bf16.mxu0 0
    %1383 = vmatpush1.bf16.msra.mxu0 0
    %1384 = vmatprep.subr.bf16.mxu0 0
    %1385 = vmatpush1.bf16.msra.mxu0 0
    %1386 = vmatprep.subr.bf16.mxu0 0
    %1387 = vmatpush1.bf16.msra.mxu0 0
    %1388 = vmatprep.subr.bf16.mxu0 0
    %1389 = vmatpush1.bf16.msra.mxu0 0
    %1390 = vmatprep.subr.bf16.mxu0 0
    %1391 = vmatpush1.bf16.msra.mxu0 0
    %1392 = vmatprep.subr.bf16.mxu0 0
    %1393 = vmatpush1.bf16.msra.mxu0 0
    %1394 = vmatprep.subr.bf16.mxu0 0
    %1395 = vmatpush1.bf16.msra.mxu0 0
    %1396 = vmatprep.subr.bf16.mxu0 0
    %1397 = vmatpush1.bf16.msra.mxu0 0
    %1398 = vmatprep.subr.bf16.mxu0 0
    %1399 = vmatpush1.bf16.msra.mxu0 0
    %1400 = vmatprep.subr.bf16.mxu0 0
    %1401 = vmatpush1.bf16.msra.mxu0 0
    %1402 = vmatprep.mubr.bf16.mxu0 0
    %1403 = vmatmul.mubr.bf16.gmra.mrb[0].mxu0 %v1359
    %v1404 = vpop.f32.mrb[0].mxu0
    %v1405 = vadd.f32 0.0, %v1404
    %v1406 = vpop.f32.mrb[0].mxu0
    %v1407 = vpop.f32.mrb[0].mxu0
    %v1408 = vadd.f32 0.0, %v1407
    %v1409 = vpop.f32.mrb[0].mxu0
    %1410 = vmatprep.mubr.bf16.mxu0 0
    %1411 = vmatmul.mubr.bf16.gmra.mrb[0].mxu0 %v1362
    %v1412 = vpop.f32.mrb[0].mxu0
    %v1413 = vadd.f32 0.0, %v1412
    %v1414 = vpop.f32.mrb[0].mxu0
    %v1415 = vpop.f32.mrb[0].mxu0
    %v1416 = vadd.f32 0.0, %v1415
    %v1417 = vpop.f32.mrb[0].mxu0
    %1418 = vmatprep.mubr.bf16.mxu0 0
    %1419 = vmatmul.mubr.bf16.gmra.mrb[0].mxu0 %v1365
    %v1420 = vpop.f32.mrb[0].mxu0
    %v1421 = vadd.f32 0.0, %v1420
    %v1422 = vpop.f32.mrb[0].mxu0
    %v1423 = vpop.f32.mrb[0].mxu0
    %v1424 = vadd.f32 0.0, %v1423
    %v1425 = vpop.f32.mrb[0].mxu0
    %1426 = vmatprep.mubr.bf16.mxu0 0
    %1427 = vmatmul.mubr.bf16.gmra.mrb[0].mxu0 %v1368
    %v1428 = vpop.f32.mrb[0].mxu0
    %v1429 = vadd.f32 0.0, %v1428
    %v1430 = vpop.f32.mrb[0].mxu0
    %v1431 = vpop.f32.mrb[0].mxu0
    %v1432 = vadd.f32 0.0, %v1431
    %v1433 = vpop.f32.mrb[0].mxu0
    %1434 = vdwg.mxu0
    %1443 = vrot.lane.b32.xlu0 %v1405, 112
    %v1444 = vpop.permute.xlu0 %1443
    %1445 = vrot.lane.b32.xlu0 %v1408, 112
    %v1446 = vpop.permute.xlu0 %1445
    %1447 = vrot.lane.b32.xlu0 %v1413, 112
    %v1448 = vpop.permute.xlu0 %1447
    %1449 = vrot.lane.b32.xlu0 %v1416, 112
    %v1450 = vpop.permute.xlu0 %1449
    %1451 = vrot.lane.b32.xlu0 %v1421, 112
    %v1452 = vpop.permute.xlu0 %1451
    %1453 = vrot.lane.b32.xlu0 %v1424, 112
    %v1454 = vpop.permute.xlu0 %1453
    %1455 = vrot.lane.b32.xlu0 %v1429, 112
    %v1456 = vpop.permute.xlu0 %1455
    %1457 = vrot.lane.b32.xlu0 %v1432, 112
    %v1458 = vpop.permute.xlu0 %1457
    %1467 = vrot.lane.b32.xlu0 %v1405, 96
    %v1468 = vpop.permute.xlu0 %1467
    %1469 = vrot.lane.b32.xlu0 %v1408, 96
    %v1470 = vpop.permute.xlu0 %1469
    %1471 = vrot.lane.b32.xlu0 %v1413, 96
    %v1472 = vpop.permute.xlu0 %1471
    %1473 = vrot.lane.b32.xlu0 %v1416, 96
    %v1474 = vpop.permute.xlu0 %1473
    %1475 = vrot.lane.b32.xlu0 %v1421, 96
    %v1476 = vpop.permute.xlu0 %1475
    %1477 = vrot.lane.b32.xlu0 %v1424, 96
    %v1478 = vpop.permute.xlu0 %1477
    %1479 = vrot.lane.b32.xlu0 %v1429, 96
    %v1480 = vpop.permute.xlu0 %1479
    %1481 = vrot.lane.b32.xlu0 %v1432, 96
    %v1482 = vpop.permute.xlu0 %1481
    %1491 = vrot.lane.b32.xlu0 %v1405, 80
    %v1492 = vpop.permute.xlu0 %1491
    %1493 = vrot.lane.b32.xlu0 %v1408, 80
    %v1494 = vpop.permute.xlu0 %1493
    %1495 = vrot.lane.b32.xlu0 %v1413, 80
    %v1496 = vpop.permute.xlu0 %1495
    %1497 = vrot.lane.b32.xlu0 %v1416, 80
    %v1498 = vpop.permute.xlu0 %1497
    %1499 = vrot.lane.b32.xlu0 %v1421, 80
    %v1500 = vpop.permute.xlu0 %1499
    %1501 = vrot.lane.b32.xlu0 %v1424, 80
    %v1502 = vpop.permute.xlu0 %1501
    %1503 = vrot.lane.b32.xlu0 %v1429, 80
    %v1504 = vpop.permute.xlu0 %1503
    %1505 = vrot.lane.b32.xlu0 %v1432, 80
    %v1506 = vpop.permute.xlu0 %1505
    %1515 = vrot.lane.b32.xlu0 %v1405, 64
    %v1516 = vpop.permute.xlu0 %1515
    %1517 = vrot.lane.b32.xlu0 %v1408, 64
    %v1518 = vpop.permute.xlu0 %1517
    %1519 = vrot.lane.b32.xlu0 %v1413, 64
    %v1520 = vpop.permute.xlu0 %1519
    %1521 = vrot.lane.b32.xlu0 %v1416, 64
    %v1522 = vpop.permute.xlu0 %1521
    %1523 = vrot.lane.b32.xlu0 %v1421, 64
    %v1524 = vpop.permute.xlu0 %1523
    %1525 = vrot.lane.b32.xlu0 %v1424, 64
    %v1526 = vpop.permute.xlu0 %1525
    %1527 = vrot.lane.b32.xlu0 %v1429, 64
    %v1528 = vpop.permute.xlu0 %1527
    %1529 = vrot.lane.b32.xlu0 %v1432, 64
    %v1530 = vpop.permute.xlu0 %1529
    %v1539 = vld [vmem:[%s13] sm:$0xff]
    %v1540 = vld [vmem:[%s13 + $0x8] sm:$0xff]
    %v1541 = vld [vmem:[%s13 + $0x10] sm:$0xff]
    %v1542 = vld [vmem:[%s13 + $0x18] sm:$0xff]
    %v1543 = vld [vmem:[%s13 + $0x20] sm:$0xff]
    %v1544 = vld [vmem:[%s13 + $0x28] sm:$0xff]
    %v1545 = vld [vmem:[%s13 + $0x30] sm:$0xff]
    %v1546 = vld [vmem:[%s13 + $0x38] sm:$0xff]
    %v1547 = vld [vmem:[%s13 + $0x40] sm:$0xff]
    %v1548 = vld [vmem:[%s13 + $0x48] sm:$0xff]
    %v1549 = vld [vmem:[%s13 + $0x50] sm:$0xff]
    %v1550 = vld [vmem:[%s13 + $0x58] sm:$0xff]
    %v1551 = vld [vmem:[%s13 + $0x60] sm:$0xff]
    %v1552 = vld [vmem:[%s13 + $0x68] sm:$0xff]
    %v1553 = vld [vmem:[%s13 + $0x70] sm:$0xff]
    %v1554 = vld [vmem:[%s13 + $0x78] sm:$0xff]
    %v1555 = vld [vmem:[%s13 + $0x80] sm:$0xff]
    %v1556 = vld [vmem:[%s13 + $0x88] sm:$0xff]
    %v1557 = vld [vmem:[%s13 + $0x90] sm:$0xff]
    %v1558 = vld [vmem:[%s13 + $0x98] sm:$0xff]
    %v1559 = vld [vmem:[%s13 + $0xa0] sm:$0xff]
    %v1560 = vld [vmem:[%s13 + $0xa8] sm:$0xff]
    %v1561 = vld [vmem:[%s13 + $0xb0] sm:$0xff]
    %v1562 = vld [vmem:[%s13 + $0xb8] sm:$0xff]
    %v1563 = vld [vmem:[%s13 + $0xc0] sm:$0xff]
    %v1564 = vld [vmem:[%s13 + $0xc8] sm:$0xff]
    %v1565 = vld [vmem:[%s13 + $0xd0] sm:$0xff]
    %v1566 = vld [vmem:[%s13 + $0xd8] sm:$0xff]
    %v1567 = vld [vmem:[%s13 + $0xe0] sm:$0xff]
    %v1568 = vld [vmem:[%s13 + $0xe8] sm:$0xff]
    %v1569 = vld [vmem:[%s13 + $0xf0] sm:$0xff]
    %v1570 = vld [vmem:[%s13 + $0xf8] sm:$0xff]
    %v1571 = vld [vmem:[%s13 + $0x100] sm:$0xff]
    %v1572 = vld [vmem:[%s13 + $0x108] sm:$0xff]
    %v1573 = vld [vmem:[%s13 + $0x110] sm:$0xff]
    %v1574 = vld [vmem:[%s13 + $0x118] sm:$0xff]
    %v1575 = vld [vmem:[%s13 + $0x120] sm:$0xff]
    %v1576 = vld [vmem:[%s13 + $0x128] sm:$0xff]
    %v1577 = vld [vmem:[%s13 + $0x130] sm:$0xff]
    %v1578 = vld [vmem:[%s13 + $0x138] sm:$0xff]
    %v1579 = vld [vmem:[%s13 + $0x140] sm:$0xff]
    %v1580 = vld [vmem:[%s13 + $0x148] sm:$0xff]
    %v1581 = vld [vmem:[%s13 + $0x150] sm:$0xff]
    %v1582 = vld [vmem:[%s13 + $0x158] sm:$0xff]
    %v1583 = vld [vmem:[%s13 + $0x160] sm:$0xff]
    %v1584 = vld [vmem:[%s13 + $0x168] sm:$0xff]
    %v1585 = vld [vmem:[%s13 + $0x170] sm:$0xff]
    %v1586 = vld [vmem:[%s13 + $0x178] sm:$0xff]
    %v1588 = vsel %vm875, %v1541, 0
    %v1591 = vsel %vm875, %v1544, 0
    %v1594 = vsel %vm875, %v1547, 0
    %v1597 = vsel %vm875, %v1550, 0
    %v1600 = vsel %vm875, %v1553, 0
    %v1603 = vsel %vm875, %v1556, 0
    %v1606 = vsel %vm875, %v1559, 0
    %v1609 = vsel %vm875, %v1562, 0
    %v1612 = vsel %vm875, %v1565, 0
    %v1615 = vsel %vm875, %v1568, 0
    %v1618 = vsel %vm875, %v1571, 0
    %v1621 = vsel %vm875, %v1574, 0
    %v1624 = vsel %vm875, %v1577, 0
    %v1627 = vsel %vm875, %v1580, 0
    %v1630 = vsel %vm875, %v1583, 0
    %v1633 = vsel %vm875, %v1586, 0
    %1635 = vmatprep.subr.mxu0 0.0
    %1636 = vmatpush1.msra.mxu0 %v1405
    %1637 = vmatprep.subr.mxu0 0.0
    %1638 = vmatpush1.msra.mxu0 %v1408
    %1639 = vmatprep.subr.mxu0 0.0
    %1640 = vmatpush1.msra.mxu0 %v1413
    %1641 = vmatprep.subr.mxu0 0.0
    %1642 = vmatpush1.msra.mxu0 %v1416
    %1643 = vmatprep.subr.mxu0 0.0
    %1644 = vmatpush1.msra.mxu0 %v1421
    %1645 = vmatprep.subr.mxu0 0.0
    %1646 = vmatpush1.msra.mxu0 %v1424
    %1647 = vmatprep.subr.mxu0 0.0
    %1648 = vmatpush1.msra.mxu0 %v1429
    %1649 = vmatprep.subr.mxu0 0.0
    %1650 = vmatpush1.msra.mxu0 %v1432
    %1651 = vmatprep.subr.mxu0 0.0
    %1652 = vmatpush1.msra.mxu0 %v1444
    %1653 = vmatprep.subr.mxu0 0.0
    %1654 = vmatpush1.msra.mxu0 %v1446
    %1655 = vmatprep.subr.mxu0 0.0
    %1656 = vmatpush1.msra.mxu0 %v1448
    %1657 = vmatprep.subr.mxu0 0.0
    %1658 = vmatpush1.msra.mxu0 %v1450
    %1659 = vmatprep.subr.mxu0 0.0
    %1660 = vmatpush1.msra.mxu0 %v1452
    %1661 = vmatprep.subr.mxu0 0.0
    %1662 = vmatpush1.msra.mxu0 %v1454
    %1663 = vmatprep.subr.mxu0 0.0
    %1664 = vmatpush1.msra.mxu0 %v1456
    %1665 = vmatprep.subr.mxu0 0.0
    %1666 = vmatpush1.msra.mxu0 %v1458
    %1667 = vmatprep.subr.mxu0 0.0
    %1668 = vmatpush1.msra.mxu0 %v1468
    %1669 = vmatprep.subr.mxu0 0.0
    %1670 = vmatpush1.msra.mxu0 %v1470
    %1671 = vmatprep.subr.mxu0 0.0
    %1672 = vmatpush1.msra.mxu0 %v1472
    %1673 = vmatprep.subr.mxu0 0.0
    %1674 = vmatpush1.msra.mxu0 %v1474
    %1675 = vmatprep.subr.mxu0 0.0
    %1676 = vmatpush1.msra.mxu0 %v1476
    %1677 = vmatprep.subr.mxu0 0.0
    %1678 = vmatpush1.msra.mxu0 %v1478
    %1679 = vmatprep.subr.mxu0 0.0
    %1680 = vmatpush1.msra.mxu0 %v1480
    %1681 = vmatprep.subr.mxu0 0.0
    %1682 = vmatpush1.msra.mxu0 %v1482
    %1683 = vmatprep.subr.mxu0 0.0
    %1684 = vmatpush1.msra.mxu0 %v1492
    %1685 = vmatprep.subr.mxu0 0.0
    %1686 = vmatpush1.msra.mxu0 %v1494
    %1687 = vmatprep.subr.mxu0 0.0
    %1688 = vmatpush1.msra.mxu0 %v1496
    %1689 = vmatprep.subr.mxu0 0.0
    %1690 = vmatpush1.msra.mxu0 %v1498
    %1691 = vmatprep.subr.mxu0 0.0
    %1692 = vmatpush1.msra.mxu0 %v1500
    %1693 = vmatprep.subr.mxu0 0.0
    %1694 = vmatpush1.msra.mxu0 %v1502
    %1695 = vmatprep.subr.mxu0 0.0
    %1696 = vmatpush1.msra.mxu0 %v1504
    %1697 = vmatprep.subr.mxu0 0.0
    %1698 = vmatpush1.msra.mxu0 %v1506
    %1699 = vmatprep.mubr.f32.mxu0 %v1540
    %1700 = vmatmul.mubr.f32.gmra.mrb[0].mxu0 %v1539
    %v1701 = vpop.f32.mrb[0].mxu0
    %v1702 = vadd.f32 0.0, %v1701
    %v1703 = vpop.f32.mrb[0].mxu0
    %1704 = vmatprep.mubr.f32.mxu0 %v1543
    %1705 = vmatmul.mubr.f32.gmra.mrb[0].mxu0 %v1542
    %v1706 = vpop.f32.mrb[0].mxu0
    %v1707 = vadd.f32 0.0, %v1706
    %v1708 = vpop.f32.mrb[0].mxu0
    %1709 = vmatprep.mubr.f32.mxu0 %v1546
    %1710 = vmatmul.mubr.f32.gmra.mrb[0].mxu0 %v1545
    %v1711 = vpop.f32.mrb[0].mxu0
    %v1712 = vadd.f32 0.0, %v1711
    %v1713 = vpop.f32.mrb[0].mxu0
    %1714 = vmatprep.mubr.f32.mxu0 %v1549
    %1715 = vmatmul.mubr.f32.gmra.mrb[0].mxu0 %v1548
    %v1716 = vpop.f32.mrb[0].mxu0
    %v1717 = vadd.f32 0.0, %v1716
    %v1718 = vpop.f32.mrb[0].mxu0
    %1719 = vmatprep.mubr.f32.mxu0 %v1552
    %1720 = vmatmul.mubr.f32.gmra.mrb[0].mxu0 %v1551
    %v1721 = vpop.f32.mrb[0].mxu0
    %v1722 = vadd.f32 0.0, %v1721
    %v1723 = vpop.f32.mrb[0].mxu0
    %1724 = vmatprep.mubr.f32.mxu0 %v1555
    %1725 = vmatmul.mubr.f32.gmra.mrb[0].mxu0 %v1554
    %v1726 = vpop.f32.mrb[0].mxu0
    %v1727 = vadd.f32 0.0, %v1726
    %v1728 = vpop.f32.mrb[0].mxu0
    %1729 = vmatprep.mubr.f32.mxu0 %v1558
    %1730 = vmatmul.mubr.f32.gmra.mrb[0].mxu0 %v1557
    %v1731 = vpop.f32.mrb[0].mxu0
    %v1732 = vadd.f32 0.0, %v1731
    %v1733 = vpop.f32.mrb[0].mxu0
    %1734 = vmatprep.mubr.f32.mxu0 %v1561
    %1735 = vmatmul.mubr.f32.gmra.mrb[0].mxu0 %v1560
    %v1736 = vpop.f32.mrb[0].mxu0
    %v1737 = vadd.f32 0.0, %v1736
    %v1738 = vpop.f32.mrb[0].mxu0
    %1739 = vmatprep.mubr.f32.mxu0 %v1564
    %1740 = vmatmul.mubr.f32.gmra.mrb[0].mxu0 %v1563
    %v1741 = vpop.f32.mrb[0].mxu0
    %v1742 = vadd.f32 0.0, %v1741
    %v1743 = vpop.f32.mrb[0].mxu0
    %1744 = vmatprep.mubr.f32.mxu0 %v1567
    %1745 = vmatmul.mubr.f32.gmra.mrb[0].mxu0 %v1566
    %v1746 = vpop.f32.mrb[0].mxu0
    %v1747 = vadd.f32 0.0, %v1746
    %v1748 = vpop.f32.mrb[0].mxu0
    %1749 = vmatprep.mubr.f32.mxu0 %v1570
    %1750 = vmatmul.mubr.f32.gmra.mrb[0].mxu0 %v1569
    %v1751 = vpop.f32.mrb[0].mxu0
    %v1752 = vadd.f32 0.0, %v1751
    %v1753 = vpop.f32.mrb[0].mxu0
    %1754 = vmatprep.mubr.f32.mxu0 %v1573
    %1755 = vmatmul.mubr.f32.gmra.mrb[0].mxu0 %v1572
    %v1756 = vpop.f32.mrb[0].mxu0
    %v1757 = vadd.f32 0.0, %v1756
    %v1758 = vpop.f32.mrb[0].mxu0
    %1759 = vmatprep.mubr.f32.mxu0 %v1576
    %1760 = vmatmul.mubr.f32.gmra.mrb[0].mxu0 %v1575
    %v1761 = vpop.f32.mrb[0].mxu0
    %v1762 = vadd.f32 0.0, %v1761
    %v1763 = vpop.f32.mrb[0].mxu0
    %1764 = vmatprep.mubr.f32.mxu0 %v1579
    %1765 = vmatmul.mubr.f32.gmra.mrb[0].mxu0 %v1578
    %v1766 = vpop.f32.mrb[0].mxu0
    %v1767 = vadd.f32 0.0, %v1766
    %v1768 = vpop.f32.mrb[0].mxu0
    %1769 = vmatprep.mubr.f32.mxu0 %v1582
    %1770 = vmatmul.mubr.f32.gmra.mrb[0].mxu0 %v1581
    %v1771 = vpop.f32.mrb[0].mxu0
    %v1772 = vadd.f32 0.0, %v1771
    %v1773 = vpop.f32.mrb[0].mxu0
    %1774 = vmatprep.mubr.f32.mxu0 %v1585
    %1775 = vmatmul.mubr.f32.gmra.mrb[0].mxu0 %v1584
    %v1776 = vpop.f32.mrb[0].mxu0
    %v1777 = vadd.f32 0.0, %v1776
    %v1778 = vpop.f32.mrb[0].mxu0
    %1779 = vdwg.mxu0
    %1780 = vmatprep.subr.mxu0 0.0
    %1781 = vmatpush1.msra.mxu0 %v1516
    %1782 = vmatprep.subr.mxu0 0.0
    %1783 = vmatpush1.msra.mxu0 %v1518
    %1784 = vmatprep.subr.mxu0 0.0
    %1785 = vmatpush1.msra.mxu0 %v1520
    %1786 = vmatprep.subr.mxu0 0.0
    %1787 = vmatpush1.msra.mxu0 %v1522
    %1788 = vmatprep.subr.mxu0 0.0
    %1789 = vmatpush1.msra.mxu0 %v1524
    %1790 = vmatprep.subr.mxu0 0.0
    %1791 = vmatpush1.msra.mxu0 %v1526
    %1792 = vmatprep.subr.mxu0 0.0
    %1793 = vmatpush1.msra.mxu0 %v1528
    %1794 = vmatprep.subr.mxu0 0.0
    %1795 = vmatpush1.msra.mxu0 %v1530
    %1796 = vmatprep.subr.mxu0 0.0
    %1797 = vmatpush1.msra.mxu0 0.0
    %1798 = vmatprep.subr.mxu0 0.0
    %1799 = vmatpush1.msra.mxu0 0.0
    %1800 = vmatprep.subr.mxu0 0.0
    %1801 = vmatpush1.msra.mxu0 0.0
    %1802 = vmatprep.subr.mxu0 0.0
    %1803 = vmatpush1.msra.mxu0 0.0
    %1804 = vmatprep.subr.mxu0 0.0
    %1805 = vmatpush1.msra.mxu0 0.0
    %1806 = vmatprep.subr.mxu0 0.0
    %1807 = vmatpush1.msra.mxu0 0.0
    %1808 = vmatprep.subr.mxu0 0.0
    %1809 = vmatpush1.msra.mxu0 0.0
    %1810 = vmatprep.subr.mxu0 0.0
    %1811 = vmatpush1.msra.mxu0 0.0
    %1812 = vmatprep.subr.mxu0 0.0
    %1813 = vmatpush1.msra.mxu0 0.0
    %1814 = vmatprep.subr.mxu0 0.0
    %1815 = vmatpush1.msra.mxu0 0.0
    %1816 = vmatprep.subr.mxu0 0.0
    %1817 = vmatpush1.msra.mxu0 0.0
    %1818 = vmatprep.subr.mxu0 0.0
    %1819 = vmatpush1.msra.mxu0 0.0
    %1820 = vmatprep.subr.mxu0 0.0
    %1821 = vmatpush1.msra.mxu0 0.0
    %1822 = vmatprep.subr.mxu0 0.0
    %1823 = vmatpush1.msra.mxu0 0.0
    %1824 = vmatprep.subr.mxu0 0.0
    %1825 = vmatpush1.msra.mxu0 0.0
    %1826 = vmatprep.subr.mxu0 0.0
    %1827 = vmatpush1.msra.mxu0 0.0
    %1828 = vmatprep.subr.mxu0 0.0
    %1829 = vmatpush1.msra.mxu0 0.0
    %1830 = vmatprep.subr.mxu0 0.0
    %1831 = vmatpush1.msra.mxu0 0.0
    %1832 = vmatprep.subr.mxu0 0.0
    %1833 = vmatpush1.msra.mxu0 0.0
    %1834 = vmatprep.subr.mxu0 0.0
    %1835 = vmatpush1.msra.mxu0 0.0
    %1836 = vmatprep.subr.mxu0 0.0
    %1837 = vmatpush1.msra.mxu0 0.0
    %1838 = vmatprep.subr.mxu0 0.0
    %1839 = vmatpush1.msra.mxu0 0.0
    %1840 = vmatprep.subr.mxu0 0.0
    %1841 = vmatpush1.msra.mxu0 0.0
    %1842 = vmatprep.subr.mxu0 0.0
    %1843 = vmatpush1.msra.mxu0 0.0
    %1844 = vmatprep.mubr.f32.mxu0 0.0
    %1845 = vmatmul.mubr.f32.gmra.mrb[0].mxu0 %v1588
    %v1846 = vpop.f32.mrb[0].mxu0
    %v1847 = vadd.f32 %v1702, %v1846
    %v1848 = vpop.f32.mrb[0].mxu0
    %1849 = vmatprep.mubr.f32.mxu0 0.0
    %1850 = vmatmul.mubr.f32.gmra.mrb[0].mxu0 %v1591
    %v1851 = vpop.f32.mrb[0].mxu0
    %v1852 = vadd.f32 %v1707, %v1851
    %v1853 = vpop.f32.mrb[0].mxu0
    %1854 = vmatprep.mubr.f32.mxu0 0.0
    %1855 = vmatmul.mubr.f32.gmra.mrb[0].mxu0 %v1594
    %v1856 = vpop.f32.mrb[0].mxu0
    %v1857 = vadd.f32 %v1712, %v1856
    %v1858 = vpop.f32.mrb[0].mxu0
    %1859 = vmatprep.mubr.f32.mxu0 0.0
    %1860 = vmatmul.mubr.f32.gmra.mrb[0].mxu0 %v1597
    %v1861 = vpop.f32.mrb[0].mxu0
    %v1862 = vadd.f32 %v1717, %v1861
    %v1863 = vpop.f32.mrb[0].mxu0
    %1864 = vmatprep.mubr.f32.mxu0 0.0
    %1865 = vmatmul.mubr.f32.gmra.mrb[0].mxu0 %v1600
    %v1866 = vpop.f32.mrb[0].mxu0
    %v1867 = vadd.f32 %v1722, %v1866
    %v1868 = vpop.f32.mrb[0].mxu0
    %1869 = vmatprep.mubr.f32.mxu0 0.0
    %1870 = vmatmul.mubr.f32.gmra.mrb[0].mxu0 %v1603
    %v1871 = vpop.f32.mrb[0].mxu0
    %v1872 = vadd.f32 %v1727, %v1871
    %v1873 = vpop.f32.mrb[0].mxu0
    %1874 = vmatprep.mubr.f32.mxu0 0.0
    %1875 = vmatmul.mubr.f32.gmra.mrb[0].mxu0 %v1606
    %v1876 = vpop.f32.mrb[0].mxu0
    %v1877 = vadd.f32 %v1732, %v1876
    %v1878 = vpop.f32.mrb[0].mxu0
    %1879 = vmatprep.mubr.f32.mxu0 0.0
    %1880 = vmatmul.mubr.f32.gmra.mrb[0].mxu0 %v1609
    %v1881 = vpop.f32.mrb[0].mxu0
    %v1882 = vadd.f32 %v1737, %v1881
    %v1883 = vpop.f32.mrb[0].mxu0
    %1884 = vmatprep.mubr.f32.mxu0 0.0
    %1885 = vmatmul.mubr.f32.gmra.mrb[0].mxu0 %v1612
    %v1886 = vpop.f32.mrb[0].mxu0
    %v1887 = vadd.f32 %v1742, %v1886
    %v1888 = vpop.f32.mrb[0].mxu0
    %1889 = vmatprep.mubr.f32.mxu0 0.0
    %1890 = vmatmul.mubr.f32.gmra.mrb[0].mxu0 %v1615
    %v1891 = vpop.f32.mrb[0].mxu0
    %v1892 = vadd.f32 %v1747, %v1891
    %v1893 = vpop.f32.mrb[0].mxu0
    %1894 = vmatprep.mubr.f32.mxu0 0.0
    %1895 = vmatmul.mubr.f32.gmra.mrb[0].mxu0 %v1618
    %v1896 = vpop.f32.mrb[0].mxu0
    %v1897 = vadd.f32 %v1752, %v1896
    %v1898 = vpop.f32.mrb[0].mxu0
    %1899 = vmatprep.mubr.f32.mxu0 0.0
    %1900 = vmatmul.mubr.f32.gmra.mrb[0].mxu0 %v1621
    %v1901 = vpop.f32.mrb[0].mxu0
    %v1902 = vadd.f32 %v1757, %v1901
    %v1903 = vpop.f32.mrb[0].mxu0
    %1904 = vmatprep.mubr.f32.mxu0 0.0
    %1905 = vmatmul.mubr.f32.gmra.mrb[0].mxu0 %v1624
    %v1906 = vpop.f32.mrb[0].mxu0
    %v1907 = vadd.f32 %v1762, %v1906
    %v1908 = vpop.f32.mrb[0].mxu0
    %1909 = vmatprep.mubr.f32.mxu0 0.0
    %1910 = vmatmul.mubr.f32.gmra.mrb[0].mxu0 %v1627
    %v1911 = vpop.f32.mrb[0].mxu0
    %v1912 = vadd.f32 %v1767, %v1911
    %v1913 = vpop.f32.mrb[0].mxu0
    %1914 = vmatprep.mubr.f32.mxu0 0.0
    %1915 = vmatmul.mubr.f32.gmra.mrb[0].mxu0 %v1630
    %v1916 = vpop.f32.mrb[0].mxu0
    %v1917 = vadd.f32 %v1772, %v1916
    %v1918 = vpop.f32.mrb[0].mxu0
    %1919 = vmatprep.mubr.f32.mxu0 0.0
    %1920 = vmatmul.mubr.f32.gmra.mrb[0].mxu0 %v1633
    %v1921 = vpop.f32.mrb[0].mxu0
    %v1922 = vadd.f32 %v1777, %v1921
    %v1923 = vpop.f32.mrb[0].mxu0
    %1924 = vdwg.mxu0
    %v1925 = vld [vmem:[#allocation12] sm:$0x1]
    %v1926 = vld [vmem:[%s15] sm:$0x1]
    %vm1927 = vcmask 130048
    %v1928 = vsel %vm1927, %v1847, 0.0
    %v1929 = vsel %vm1927, %v1852, 0.0
    %v1930 = vadd.f32 %v1928, %v1929
    %v1931 = vsel %vm1927, %v1857, 0.0
    %v1932 = vadd.f32 %v1930, %v1931
    %v1933 = vsel %vm1927, %v1862, 0.0
    %v1934 = vadd.f32 %v1932, %v1933
    %v1935 = vsel %vm1927, %v1867, 0.0
    %v1936 = vadd.f32 %v1934, %v1935
    %v1937 = vsel %vm1927, %v1872, 0.0
    %v1938 = vadd.f32 %v1936, %v1937
    %v1939 = vsel %vm1927, %v1877, 0.0
    %v1940 = vadd.f32 %v1938, %v1939
    %v1941 = vsel %vm1927, %v1882, 0.0
    %v1942 = vadd.f32 %v1940, %v1941
    %v1943 = vsel %vm1927, %v1887, 0.0
    %v1944 = vadd.f32 %v1942, %v1943
    %v1945 = vsel %vm1927, %v1892, 0.0
    %v1946 = vadd.f32 %v1944, %v1945
    %v1947 = vsel %vm1927, %v1897, 0.0
    %v1948 = vadd.f32 %v1946, %v1947
    %v1949 = vsel %vm1927, %v1902, 0.0
    %v1950 = vadd.f32 %v1948, %v1949
    %v1951 = vsel %vm1927, %v1907, 0.0
    %v1952 = vadd.f32 %v1950, %v1951
    %v1953 = vsel %vm1927, %v1912, 0.0
    %v1954 = vadd.f32 %v1952, %v1953
    %v1955 = vsel %vm1927, %v1917, 0.0
    %v1956 = vadd.f32 %v1954, %v1955
    %v1957 = vsel %vm1927, %v1922, 0.0
    %v1958 = vadd.f32 %v1956, %v1957
    %v1959 = vrot.slane %v1958, 4
    %v1960 = vadd.f32 %v1958, %v1959
    %v1961 = vrot.slane %v1960, 2
    %v1962 = vadd.f32 %v1960, %v1961
    %v1963 = vrot.slane %v1962, 1
    %v1964 = vadd.f32 %v1962, %v1963
    %v1965 = vmul.f32 %v1964, 0.0078125
    %v1966 = vsub.f32 %v1847, %v1965
    %v1967 = vsub.f32 %v1852, %v1965
    %v1968 = vsub.f32 %v1857, %v1965
    %v1969 = vsub.f32 %v1862, %v1965
    %v1970 = vsub.f32 %v1867, %v1965
    %v1971 = vsub.f32 %v1872, %v1965
    %v1972 = vsub.f32 %v1877, %v1965
    %v1973 = vsub.f32 %v1882, %v1965
    %v1974 = vsub.f32 %v1887, %v1965
    %v1975 = vsub.f32 %v1892, %v1965
    %v1976 = vsub.f32 %v1897, %v1965
    %v1977 = vsub.f32 %v1902, %v1965
    %v1978 = vsub.f32 %v1907, %v1965
    %v1979 = vsub.f32 %v1912, %v1965
    %v1980 = vsub.f32 %v1917, %v1965
    %v1981 = vsub.f32 %v1922, %v1965
    %v1982 = vmul.f32 %v1966, %v1966
    %v1983 = vmul.f32 %v1967, %v1967
    %v1984 = vmul.f32 %v1968, %v1968
    %v1985 = vmul.f32 %v1969, %v1969
    %v1986 = vmul.f32 %v1970, %v1970
    %v1987 = vmul.f32 %v1971, %v1971
    %v1988 = vmul.f32 %v1972, %v1972
    %v1989 = vmul.f32 %v1973, %v1973
    %v1990 = vmul.f32 %v1974, %v1974
    %v1991 = vmul.f32 %v1975, %v1975
    %v1992 = vmul.f32 %v1976, %v1976
    %v1993 = vmul.f32 %v1977, %v1977
    %v1994 = vmul.f32 %v1978, %v1978
    %v1995 = vmul.f32 %v1979, %v1979
    %v1996 = vmul.f32 %v1980, %v1980
    %v1997 = vmul.f32 %v1981, %v1981
    %v1998 = vsel %vm1927, %v1982, 0.0
    %v1999 = vsel %vm1927, %v1983, 0.0
    %v2000 = vadd.f32 %v1998, %v1999
    %v2001 = vsel %vm1927, %v1984, 0.0
    %v2002 = vadd.f32 %v2000, %v2001
    %v2003 = vsel %vm1927, %v1985, 0.0
    %v2004 = vadd.f32 %v2002, %v2003
    %v2005 = vsel %vm1927, %v1986, 0.0
    %v2006 = vadd.f32 %v2004, %v2005
    %v2007 = vsel %vm1927, %v1987, 0.0
    %v2008 = vadd.f32 %v2006, %v2007
    %v2009 = vsel %vm1927, %v1988, 0.0
    %v2010 = vadd.f32 %v2008, %v2009
    %v2011 = vsel %vm1927, %v1989, 0.0
    %v2012 = vadd.f32 %v2010, %v2011
    %v2013 = vsel %vm1927, %v1990, 0.0
    %v2014 = vadd.f32 %v2012, %v2013
    %v2015 = vsel %vm1927, %v1991, 0.0
    %v2016 = vadd.f32 %v2014, %v2015
    %v2017 = vsel %vm1927, %v1992, 0.0
    %v2018 = vadd.f32 %v2016, %v2017
    %v2019 = vsel %vm1927, %v1993, 0.0
    %v2020 = vadd.f32 %v2018, %v2019
    %v2021 = vsel %vm1927, %v1994, 0.0
    %v2022 = vadd.f32 %v2020, %v2021
    %v2023 = vsel %vm1927, %v1995, 0.0
    %v2024 = vadd.f32 %v2022, %v2023
    %v2025 = vsel %vm1927, %v1996, 0.0
    %v2026 = vadd.f32 %v2024, %v2025
    %v2027 = vsel %vm1927, %v1997, 0.0
    %v2028 = vadd.f32 %v2026, %v2027
    %v2029 = vrot.slane %v2028, 4
    %v2030 = vadd.f32 %v2028, %v2029
    %v2031 = vrot.slane %v2030, 2
    %v2032 = vadd.f32 %v2030, %v2031
    %v2033 = vrot.slane %v2032, 1
    %v2034 = vadd.f32 %v2032, %v2033
    %v2035 = vmul.f32 %v2034, 0.0078125
    %v2036 = vadd.f32 %v2035, 1e-05
    %v2037 = vrsqrt.pop %v2036
    %v2038 = vmul.f32 %v1925, %v2037
    %v2040 = vlaneseq
    %v2041 = vshrl.u32 %v2040, 7
    %v2042 = vsub.s32 0, %v2041
    %v2043 = vrot.slane %v2038, %v2042
    %v2045 = vmul.f32 %v1847, %v2043
    %v2046 = vmul.f32 %v1852, %v2043
    %v2047 = vmul.f32 %v1857, %v2043
    %v2048 = vmul.f32 %v1862, %v2043
    %v2049 = vmul.f32 %v1867, %v2043
    %v2050 = vmul.f32 %v1872, %v2043
    %v2051 = vmul.f32 %v1877, %v2043
    %v2052 = vmul.f32 %v1882, %v2043
    %v2053 = vmul.f32 %v1887, %v2043
    %v2054 = vmul.f32 %v1892, %v2043
    %v2055 = vmul.f32 %v1897, %v2043
    %v2056 = vmul.f32 %v1902, %v2043
    %v2057 = vmul.f32 %v1907, %v2043
    %v2058 = vmul.f32 %v1912, %v2043
    %v2059 = vmul.f32 %v1917, %v2043
    %v2060 = vmul.f32 %v1922, %v2043
    %v2061 = vmul.f32 %v1965, %v2038
    %v2062 = vsub.f32 %v1926, %v2061
    %v2064 = vlaneseq
    %v2065 = vshrl.u32 %v2064, 7
    %v2066 = vsub.s32 0, %v2065
    %v2067 = vrot.slane %v2062, %v2066
    %v2069 = vadd.f32 %v2045, %v2067
    %v2070 = vadd.f32 %v2046, %v2067
    %v2071 = vadd.f32 %v2047, %v2067
    %v2072 = vadd.f32 %v2048, %v2067
    %v2073 = vadd.f32 %v2049, %v2067
    %v2074 = vadd.f32 %v2050, %v2067
    %v2075 = vadd.f32 %v2051, %v2067
    %v2076 = vadd.f32 %v2052, %v2067
    %v2077 = vadd.f32 %v2053, %v2067
    %v2078 = vadd.f32 %v2054, %v2067
    %v2079 = vadd.f32 %v2055, %v2067
    %v2080 = vadd.f32 %v2056, %v2067
    %v2081 = vadd.f32 %v2057, %v2067
    %v2082 = vadd.f32 %v2058, %v2067
    %v2083 = vadd.f32 %v2059, %v2067
    %v2084 = vadd.f32 %v2060, %v2067
    %v2085 = vmax.f32 %v2069, 0.0
    %v2086 = vmax.f32 %v2070, 0.0
    %v2087 = vmax.f32 %v2071, 0.0
    %v2088 = vmax.f32 %v2072, 0.0
    %v2089 = vmax.f32 %v2073, 0.0
    %v2090 = vmax.f32 %v2074, 0.0
    %v2091 = vmax.f32 %v2075, 0.0
    %v2092 = vmax.f32 %v2076, 0.0
    %v2093 = vmax.f32 %v2077, 0.0
    %v2094 = vmax.f32 %v2078, 0.0
    %v2095 = vmax.f32 %v2079, 0.0
    %v2096 = vmax.f32 %v2080, 0.0
    %v2097 = vmax.f32 %v2081, 0.0
    %v2098 = vmax.f32 %v2082, 0.0
    %v2099 = vmax.f32 %v2083, 0.0
    %v2100 = vmax.f32 %v2084, 0.0
    %v2101 = vpack.c.bf16 %v2086, %v2085
    %v2102 = vpack.c.bf16 %v2088, %v2087
    %v2103 = vpack.c.bf16 %v2090, %v2089
    %v2104 = vpack.c.bf16 %v2092, %v2091
    %v2105 = vpack.c.bf16 %v2094, %v2093
    %v2106 = vpack.c.bf16 %v2096, %v2095
    %v2107 = vpack.c.bf16 %v2098, %v2097
    %v2108 = vpack.c.bf16 %v2100, %v2099
    %v2109 = vld [vmem:[%s16] sm:$0xf]
    %v2110 = vld [vmem:[%s16 + $0x4] sm:$0xf]
    %v2113 = vunpack.c.l.b16 %v2109
    %v2114 = vunpack.c.l.b16 %v2110
    %v2115 = vpack.c.b16 %v2114, %v2113
    %v2118 = vsel %vm1927, %v2101, 0
    %v2121 = vsel %vm1927, %v2102, 0
    %v2124 = vsel %vm1927, %v2103, 0
    %v2127 = vsel %vm1927, %v2104, 0
    %v2130 = vsel %vm1927, %v2105, 0
    %v2133 = vsel %vm1927, %v2106, 0
    %v2136 = vsel %vm1927, %v2107, 0
    %v2139 = vsel %vm1927, %v2108, 0
    %2141 = vmatprep.subr.bf16.mxu0 0
    %2142 = vmatpush1.bf16.msra.mxu0 %v2115
    %2143 = vmatprep.subr.bf16.mxu0 0
    %2144 = vmatpush1.bf16.msra.mxu0 0
    %2145 = vmatprep.subr.bf16.mxu0 0
    %2146 = vmatpush1.bf16.msra.mxu0 0
    %2147 = vmatprep.subr.bf16.mxu0 0
    %2148 = vmatpush1.bf16.msra.mxu0 0
    %2149 = vmatprep.subr.bf16.mxu0 0
    %2150 = vmatpush1.bf16.msra.mxu0 0
    %2151 = vmatprep.subr.bf16.mxu0 0
    %2152 = vmatpush1.bf16.msra.mxu0 0
    %2153 = vmatprep.subr.bf16.mxu0 0
    %2154 = vmatpush1.bf16.msra.mxu0 0
    %2155 = vmatprep.subr.bf16.mxu0 0
    %2156 = vmatpush1.bf16.msra.mxu0 0
    %2157 = vmatprep.subr.bf16.mxu0 0
    %2158 = vmatpush1.bf16.msra.mxu0 0
    %2159 = vmatprep.subr.bf16.mxu0 0
    %2160 = vmatpush1.bf16.msra.mxu0 0
    %2161 = vmatprep.subr.bf16.mxu0 0
    %2162 = vmatpush1.bf16.msra.mxu0 0
    %2163 = vmatprep.subr.bf16.mxu0 0
    %2164 = vmatpush1.bf16.msra.mxu0 0
    %2165 = vmatprep.subr.bf16.mxu0 0
    %2166 = vmatpush1.bf16.msra.mxu0 0
    %2167 = vmatprep.subr.bf16.mxu0 0
    %2168 = vmatpush1.bf16.msra.mxu0 0
    %2169 = vmatprep.subr.bf16.mxu0 0
    %2170 = vmatpush1.bf16.msra.mxu0 0
    %2171 = vmatprep.subr.bf16.mxu0 0
    %2172 = vmatpush1.bf16.msra.mxu0 0
    %2173 = vmatprep.mubr.bf16.mxu0 0
    %2174 = vmatmul.mubr.bf16.gmra.mrb[0].mxu0 %v2118
    %v2175 = vpop.f32.mrb[0].mxu0
    %v2176 = vadd.f32 0.0, %v2175
    %v2177 = vpop.f32.mrb[0].mxu0
    %v2178 = vpop.f32.mrb[0].mxu0
    %v2179 = vadd.f32 0.0, %v2178
    %v2180 = vpop.f32.mrb[0].mxu0
    %2181 = vmatprep.mubr.bf16.mxu0 0
    %2182 = vmatmul.mubr.bf16.gmra.mrb[0].mxu0 %v2121
    %v2183 = vpop.f32.mrb[0].mxu0
    %v2184 = vadd.f32 0.0, %v2183
    %v2185 = vpop.f32.mrb[0].mxu0
    %v2186 = vpop.f32.mrb[0].mxu0
    %v2187 = vadd.f32 0.0, %v2186
    %v2188 = vpop.f32.mrb[0].mxu0
    %2189 = vmatprep.mubr.bf16.mxu0 0
    %2190 = vmatmul.mubr.bf16.gmra.mrb[0].mxu0 %v2124
    %v2191 = vpop.f32.mrb[0].mxu0
    %v2192 = vadd.f32 0.0, %v2191
    %v2193 = vpop.f32.mrb[0].mxu0
    %v2194 = vpop.f32.mrb[0].mxu0
    %v2195 = vadd.f32 0.0, %v2194
    %v2196 = vpop.f32.mrb[0].mxu0
    %2197 = vmatprep.mubr.bf16.mxu0 0
    %2198 = vmatmul.mubr.bf16.gmra.mrb[0].mxu0 %v2127
    %v2199 = vpop.f32.mrb[0].mxu0
    %v2200 = vadd.f32 0.0, %v2199
    %v2201 = vpop.f32.mrb[0].mxu0
    %v2202 = vpop.f32.mrb[0].mxu0
    %v2203 = vadd.f32 0.0, %v2202
    %v2204 = vpop.f32.mrb[0].mxu0
    %2205 = vmatprep.mubr.bf16.mxu0 0
    %2206 = vmatmul.mubr.bf16.gmra.mrb[0].mxu0 %v2130
    %v2207 = vpop.f32.mrb[0].mxu0
    %v2208 = vadd.f32 0.0, %v2207
    %v2209 = vpop.f32.mrb[0].mxu0
    %v2210 = vpop.f32.mrb[0].mxu0
    %v2211 = vadd.f32 0.0, %v2210
    %v2212 = vpop.f32.mrb[0].mxu0
    %2213 = vmatprep.mubr.bf16.mxu0 0
    %2214 = vmatmul.mubr.bf16.gmra.mrb[0].mxu0 %v2133
    %v2215 = vpop.f32.mrb[0].mxu0
    %v2216 = vadd.f32 0.0, %v2215
    %v2217 = vpop.f32.mrb[0].mxu0
    %v2218 = vpop.f32.mrb[0].mxu0
    %v2219 = vadd.f32 0.0, %v2218
    %v2220 = vpop.f32.mrb[0].mxu0
    %2221 = vmatprep.mubr.bf16.mxu0 0
    %2222 = vmatmul.mubr.bf16.gmra.mrb[0].mxu0 %v2136
    %v2223 = vpop.f32.mrb[0].mxu0
    %v2224 = vadd.f32 0.0, %v2223
    %v2225 = vpop.f32.mrb[0].mxu0
    %v2226 = vpop.f32.mrb[0].mxu0
    %v2227 = vadd.f32 0.0, %v2226
    %v2228 = vpop.f32.mrb[0].mxu0
    %2229 = vmatprep.mubr.bf16.mxu0 0
    %2230 = vmatmul.mubr.bf16.gmra.mrb[0].mxu0 %v2139
    %v2231 = vpop.f32.mrb[0].mxu0
    %v2232 = vadd.f32 0.0, %v2231
    %v2233 = vpop.f32.mrb[0].mxu0
    %v2234 = vpop.f32.mrb[0].mxu0
    %v2235 = vadd.f32 0.0, %v2234
    %v2236 = vpop.f32.mrb[0].mxu0
    %2237 = vdwg.mxu0
    %vm2238 = vcmask 392192
    %v2239 = vsel %vm2238, %v2176, 0.0
    %v2240 = vsel %vm2238, %v2179, 0.0
    %v2241 = vadd.f32 %v2239, %v2240
    %v2242 = vsel %vm2238, %v2184, 0.0
    %v2243 = vadd.f32 %v2241, %v2242
    %v2244 = vsel %vm2238, %v2187, 0.0
    %v2245 = vadd.f32 %v2243, %v2244
    %v2246 = vsel %vm2238, %v2192, 0.0
    %v2247 = vadd.f32 %v2245, %v2246
    %v2248 = vsel %vm2238, %v2195, 0.0
    %v2249 = vadd.f32 %v2247, %v2248
    %v2250 = vsel %vm2238, %v2200, 0.0
    %v2251 = vadd.f32 %v2249, %v2250
    %v2252 = vsel %vm2238, %v2203, 0.0
    %v2253 = vadd.f32 %v2251, %v2252
    %v2254 = vsel %vm2238, %v2208, 0.0
    %v2255 = vadd.f32 %v2253, %v2254
    %v2256 = vsel %vm2238, %v2211, 0.0
    %v2257 = vadd.f32 %v2255, %v2256
    %v2258 = vsel %vm2238, %v2216, 0.0
    %v2259 = vadd.f32 %v2257, %v2258
    %v2260 = vsel %vm2238, %v2219, 0.0
    %v2261 = vadd.f32 %v2259, %v2260
    %v2262 = vsel %vm2238, %v2224, 0.0
    %v2263 = vadd.f32 %v2261, %v2262
    %v2264 = vsel %vm2238, %v2227, 0.0
    %v2265 = vadd.f32 %v2263, %v2264
    %v2266 = vsel %vm2238, %v2232, 0.0
    %v2267 = vadd.f32 %v2265, %v2266
    %v2268 = vsel %vm2238, %v2235, 0.0
    %v2269 = vadd.f32 %v2267, %v2268
    %v2270 = vrot.slane %v2269, 4
    %v2271 = vadd.f32 %v2269, %v2270
    %v2272 = vrot.slane %v2271, 2
    %v2273 = vadd.f32 %v2271, %v2272
    %v2274 = vrot.slane %v2273, 1
    %v2275 = vadd.f32 %v2273, %v2274
    %2277 = vrot.lane.b32.xlu0 %v2275, 112
    %v2278 = vpop.permute.xlu0 %2277
    %v2280 = vadd.f32 %v2275, %v2278
    %2281 = vrot.lane.b32.xlu0 %v2275, 96
    %v2282 = vpop.permute.xlu0 %2281
    %v2284 = vadd.f32 %v2280, %v2282
    %v2285 = vmul.f32 %v2284, 0.0026041667
    %2287 = vrot.lane.b32.xlu0 %v2285, 16
    %v2288 = vpop.permute.xlu0 %2287
    %2290 = vrot.lane.b32.xlu0 %v2285, 32
    %v2291 = vpop.permute.xlu0 %2290
    %v2293 = vsel %vm1927, %v2285, %v2288
    %v2294 = vsel %vm215, %v2293, %v2291
    %v2295 = vlaneseq
    %v2296 = vshrl.u32 %v2295, 7
    %v2297 = vsub.s32 0, %v2296
    %v2298 = vrot.slane %v2294, %v2297
    %v2299 = vsub.f32 %v2176, %v2298
    %v2300 = vsub.f32 %v2179, %v2298
    %v2301 = vsub.f32 %v2184, %v2298
    %v2302 = vsub.f32 %v2187, %v2298
    %v2303 = vsub.f32 %v2192, %v2298
    %v2304 = vsub.f32 %v2195, %v2298
    %v2305 = vsub.f32 %v2200, %v2298
    %v2306 = vsub.f32 %v2203, %v2298
    %v2307 = vsub.f32 %v2208, %v2298
    %v2308 = vsub.f32 %v2211, %v2298
    %v2309 = vsub.f32 %v2216, %v2298
    %v2310 = vsub.f32 %v2219, %v2298
    %v2311 = vsub.f32 %v2224, %v2298
    %v2312 = vsub.f32 %v2227, %v2298
    %v2313 = vsub.f32 %v2232, %v2298
    %v2314 = vsub.f32 %v2235, %v2298
    %v2315 = vmul.f32 %v2299, %v2299
    %v2316 = vmul.f32 %v2300, %v2300
    %v2317 = vmul.f32 %v2301, %v2301
    %v2318 = vmul.f32 %v2302, %v2302
    %v2319 = vmul.f32 %v2303, %v2303
    %v2320 = vmul.f32 %v2304, %v2304
    %v2321 = vmul.f32 %v2305, %v2305
    %v2322 = vmul.f32 %v2306, %v2306
    %v2323 = vmul.f32 %v2307, %v2307
    %v2324 = vmul.f32 %v2308, %v2308
    %v2325 = vmul.f32 %v2309, %v2309
    %v2326 = vmul.f32 %v2310, %v2310
    %v2327 = vmul.f32 %v2311, %v2311
    %v2328 = vmul.f32 %v2312, %v2312
    %v2329 = vmul.f32 %v2313, %v2313
    %v2330 = vmul.f32 %v2314, %v2314
    %v2331 = vsel %vm2238, %v2315, 0.0
    %v2332 = vsel %vm2238, %v2316, 0.0
    %v2333 = vadd.f32 %v2331, %v2332
    %v2334 = vsel %vm2238, %v2317, 0.0
    %v2335 = vadd.f32 %v2333, %v2334
    %v2336 = vsel %vm2238, %v2318, 0.0
    %v2337 = vadd.f32 %v2335, %v2336
    %v2338 = vsel %vm2238, %v2319, 0.0
    %v2339 = vadd.f32 %v2337, %v2338
    %v2340 = vsel %vm2238, %v2320, 0.0
    %v2341 = vadd.f32 %v2339, %v2340
    %v2342 = vsel %vm2238, %v2321, 0.0
    %v2343 = vadd.f32 %v2341, %v2342
    %v2344 = vsel %vm2238, %v2322, 0.0
    %v2345 = vadd.f32 %v2343, %v2344
    %v2346 = vsel %vm2238, %v2323, 0.0
    %v2347 = vadd.f32 %v2345, %v2346
    %v2348 = vsel %vm2238, %v2324, 0.0
    %v2349 = vadd.f32 %v2347, %v2348
    %v2350 = vsel %vm2238, %v2325, 0.0
    %v2351 = vadd.f32 %v2349, %v2350
    %v2352 = vsel %vm2238, %v2326, 0.0
    %v2353 = vadd.f32 %v2351, %v2352
    %v2354 = vsel %vm2238, %v2327, 0.0
    %v2355 = vadd.f32 %v2353, %v2354
    %v2356 = vsel %vm2238, %v2328, 0.0
    %v2357 = vadd.f32 %v2355, %v2356
    %v2358 = vsel %vm2238, %v2329, 0.0
    %v2359 = vadd.f32 %v2357, %v2358
    %v2360 = vsel %vm2238, %v2330, 0.0
    %v2361 = vadd.f32 %v2359, %v2360
    %v2362 = vrot.slane %v2361, 4
    %v2363 = vadd.f32 %v2361, %v2362
    %v2364 = vrot.slane %v2363, 2
    %v2365 = vadd.f32 %v2363, %v2364
    %v2366 = vrot.slane %v2365, 1
    %v2367 = vadd.f32 %v2365, %v2366
    %2369 = vrot.lane.b32.xlu0 %v2367, 112
    %v2370 = vpop.permute.xlu0 %2369
    %v2372 = vadd.f32 %v2367, %v2370
    %2373 = vrot.lane.b32.xlu0 %v2367, 96
    %v2374 = vpop.permute.xlu0 %2373
    %v2376 = vadd.f32 %v2372, %v2374
    %v2377 = vmul.f32 %v2376, 0.0026041667
    %v2378 = vld [vmem:[%s17] sm:$0x1]
    %v2379 = vadd.f32 %v2377, 1e-05
    %v2380 = vrsqrt.pop %v2379
    %v2381 = vmul.f32 %v2378, %v2380
    %v2382 = vld [vmem:[%s18] sm:$0x1]
    %v2383 = vmul.f32 %v2285, %v2381
    %v2384 = vsub.f32 %v2382, %v2383
    %v2386 = vlaneseq
    %v2387 = vshrl.u32 %v2386, 7
    %v2388 = vsub.s32 0, %v2387
    %v2389 = vrot.slane %v2381, %v2388
    %2390 = vrot.lane.b32.xlu0 %v2389, 16
    %v2391 = vpop.permute.xlu0 %2390
    %2393 = vrot.lane.b32.xlu0 %v2389, 32
    %v2394 = vpop.permute.xlu0 %2393
    %v2396 = vsel %vm1927, %v2381, %v2391
    %v2397 = vsel %vm215, %v2396, %v2394
    %v2399 = vlaneseq
    %v2400 = vshrl.u32 %v2399, 7
    %v2401 = vsub.s32 0, %v2400
    %v2402 = vrot.slane %v2384, %v2401
    %2403 = vrot.lane.b32.xlu0 %v2402, 16
    %v2404 = vpop.permute.xlu0 %2403
    %2406 = vrot.lane.b32.xlu0 %v2402, 32
    %v2407 = vpop.permute.xlu0 %2406
    %v2409 = vsel %vm1927, %v2384, %v2404
    %v2410 = vsel %vm215, %v2409, %v2407
    %v2411 = vlaneseq
    %v2412 = vshrl.u32 %v2411, 7
    %v2413 = vsub.s32 0, %v2412
    %v2414 = vrot.slane %v2397, %v2413
    %v2415 = vmul.f32 %v2176, %v2414
    %v2416 = vmul.f32 %v2179, %v2414
    %v2417 = vmul.f32 %v2184, %v2414
    %v2418 = vmul.f32 %v2187, %v2414
    %v2419 = vmul.f32 %v2192, %v2414
    %v2420 = vmul.f32 %v2195, %v2414
    %v2421 = vmul.f32 %v2200, %v2414
    %v2422 = vmul.f32 %v2203, %v2414
    %v2423 = vmul.f32 %v2208, %v2414
    %v2424 = vmul.f32 %v2211, %v2414
    %v2425 = vmul.f32 %v2216, %v2414
    %v2426 = vmul.f32 %v2219, %v2414
    %v2427 = vmul.f32 %v2224, %v2414
    %v2428 = vmul.f32 %v2227, %v2414
    %v2429 = vmul.f32 %v2232, %v2414
    %v2430 = vmul.f32 %v2235, %v2414
    %v2431 = vlaneseq
    %v2432 = vshrl.u32 %v2431, 7
    %v2433 = vsub.s32 0, %v2432
    %v2434 = vrot.slane %v2410, %v2433
    %v2435 = vadd.f32 %v2415, %v2434
    %v2436 = vadd.f32 %v2416, %v2434
    %v2437 = vadd.f32 %v2417, %v2434
    %v2438 = vadd.f32 %v2418, %v2434
    %v2439 = vadd.f32 %v2419, %v2434
    %v2440 = vadd.f32 %v2420, %v2434
    %v2441 = vadd.f32 %v2421, %v2434
    %v2442 = vadd.f32 %v2422, %v2434
    %v2443 = vadd.f32 %v2423, %v2434
    %v2444 = vadd.f32 %v2424, %v2434
    %v2445 = vadd.f32 %v2425, %v2434
    %v2446 = vadd.f32 %v2426, %v2434
    %v2447 = vadd.f32 %v2427, %v2434
    %v2448 = vadd.f32 %v2428, %v2434
    %v2449 = vadd.f32 %v2429, %v2434
    %v2450 = vadd.f32 %v2430, %v2434
    %v2451 = vmax.f32 %v2435, 0.0
    %v2452 = vmax.f32 %v2436, 0.0
    %v2453 = vmax.f32 %v2437, 0.0
    %v2454 = vmax.f32 %v2438, 0.0
    %v2455 = vmax.f32 %v2439, 0.0
    %v2456 = vmax.f32 %v2440, 0.0
    %v2457 = vmax.f32 %v2441, 0.0
    %v2458 = vmax.f32 %v2442, 0.0
    %v2459 = vmax.f32 %v2443, 0.0
    %v2460 = vmax.f32 %v2444, 0.0
    %v2461 = vmax.f32 %v2445, 0.0
    %v2462 = vmax.f32 %v2446, 0.0
    %v2463 = vmax.f32 %v2447, 0.0
    %v2464 = vmax.f32 %v2448, 0.0
    %v2465 = vmax.f32 %v2449, 0.0
    %v2466 = vmax.f32 %v2450, 0.0
    %v2467 = vpack.c.bf16 %v2452, %v2451
    %v2468 = vpack.c.bf16 %v2454, %v2453
    %v2469 = vpack.c.bf16 %v2456, %v2455
    %v2470 = vpack.c.bf16 %v2458, %v2457
    %v2471 = vpack.c.bf16 %v2460, %v2459
    %v2472 = vpack.c.bf16 %v2462, %v2461
    %v2473 = vpack.c.bf16 %v2464, %v2463
    %v2474 = vpack.c.bf16 %v2466, %v2465
    %v2475 = vld [vmem:[#allocation13] sm:$0xf]
    %v2476 = vld [vmem:[#allocation13 + $0x4] sm:$0xf]
    %v2477 = vld [vmem:[#allocation13 + $0x8] sm:$0xf]
    %v2478 = vld [vmem:[#allocation13 + $0xc] sm:$0xf]
    %v2479 = vld [vmem:[#allocation13 + $0x10] sm:$0xf]
    %v2480 = vld [vmem:[#allocation13 + $0x14] sm:$0xf]
    %v2487 = vunpack.c.l.b16 %v2475
    %v2488 = vunpack.c.l.b16 %v2476
    %v2489 = vunpack.c.l.b16 %v2477
    %v2490 = vunpack.c.l.b16 %v2478
    %v2491 = vunpack.c.l.b16 %v2479
    %v2492 = vunpack.c.l.b16 %v2480
    %v2493 = vpack.c.b16 %v2488, %v2487
    %v2494 = vpack.c.b16 %v2490, %v2489
    %v2495 = vpack.c.b16 %v2492, %v2491
    %v2500 = vsel %vm2238, %v2467, 0
    %v2503 = vsel %vm2238, %v2468, 0
    %v2506 = vsel %vm2238, %v2469, 0
    %v2509 = vsel %vm2238, %v2470, 0
    %v2512 = vsel %vm2238, %v2471, 0
    %v2515 = vsel %vm2238, %v2472, 0
    %v2518 = vsel %vm2238, %v2473, 0
    %v2521 = vsel %vm2238, %v2474, 0
    %2523 = vmatprep.subr.bf16.mxu0 0
    %2524 = vmatpush1.bf16.msra.mxu0 %v2493
    %2525 = vmatprep.subr.bf16.mxu0 0
    %2526 = vmatpush1.bf16.msra.mxu0 %v2494
    %2527 = vmatprep.subr.bf16.mxu0 0
    %2528 = vmatpush1.bf16.msra.mxu0 %v2495
    %2529 = vmatprep.subr.bf16.mxu0 0
    %2530 = vmatpush1.bf16.msra.mxu0 0
    %2531 = vmatprep.subr.bf16.mxu0 0
    %2532 = vmatpush1.bf16.msra.mxu0 0
    %2533 = vmatprep.subr.bf16.mxu0 0
    %2534 = vmatpush1.bf16.msra.mxu0 0
    %2535 = vmatprep.subr.bf16.mxu0 0
    %2536 = vmatpush1.bf16.msra.mxu0 0
    %2537 = vmatprep.subr.bf16.mxu0 0
    %2538 = vmatpush1.bf16.msra.mxu0 0
    %2539 = vmatprep.subr.bf16.mxu0 0
    %2540 = vmatpush1.bf16.msra.mxu0 0
    %2541 = vmatprep.subr.bf16.mxu0 0
    %2542 = vmatpush1.bf16.msra.mxu0 0
    %2543 = vmatprep.subr.bf16.mxu0 0
    %2544 = vmatpush1.bf16.msra.mxu0 0
    %2545 = vmatprep.subr.bf16.mxu0 0
    %2546 = vmatpush1.bf16.msra.mxu0 0
    %2547 = vmatprep.subr.bf16.mxu0 0
    %2548 = vmatpush1.bf16.msra.mxu0 0
    %2549 = vmatprep.subr.bf16.mxu0 0
    %2550 = vmatpush1.bf16.msra.mxu0 0
    %2551 = vmatprep.subr.bf16.mxu0 0
    %2552 = vmatpush1.bf16.msra.mxu0 0
    %2553 = vmatprep.subr.bf16.mxu0 0
    %2554 = vmatpush1.bf16.msra.mxu0 0
    %2555 = vmatprep.mubr.bf16.mxu0 0
    %2556 = vmatmul.mubr.bf16.gmra.mrb[0].mxu0 %v2500
    %v2557 = vpop.f32.mrb[0].mxu0
    %v2558 = vadd.f32 0.0, %v2557
    %v2559 = vpop.f32.mrb[0].mxu0
    %v2560 = vpop.f32.mrb[0].mxu0
    %v2561 = vadd.f32 0.0, %v2560
    %v2562 = vpop.f32.mrb[0].mxu0
    %2563 = vmatprep.mubr.bf16.mxu0 0
    %2564 = vmatmul.mubr.bf16.gmra.mrb[0].mxu0 %v2503
    %v2565 = vpop.f32.mrb[0].mxu0
    %v2566 = vadd.f32 0.0, %v2565
    %v2567 = vpop.f32.mrb[0].mxu0
    %v2568 = vpop.f32.mrb[0].mxu0
    %v2569 = vadd.f32 0.0, %v2568
    %v2570 = vpop.f32.mrb[0].mxu0
    %2571 = vmatprep.mubr.bf16.mxu0 0
    %2572 = vmatmul.mubr.bf16.gmra.mrb[0].mxu0 %v2506
    %v2573 = vpop.f32.mrb[0].mxu0
    %v2574 = vadd.f32 0.0, %v2573
    %v2575 = vpop.f32.mrb[0].mxu0
    %v2576 = vpop.f32.mrb[0].mxu0
    %v2577 = vadd.f32 0.0, %v2576
    %v2578 = vpop.f32.mrb[0].mxu0
    %2579 = vmatprep.mubr.bf16.mxu0 0
    %2580 = vmatmul.mubr.bf16.gmra.mrb[0].mxu0 %v2509
    %v2581 = vpop.f32.mrb[0].mxu0
    %v2582 = vadd.f32 0.0, %v2581
    %v2583 = vpop.f32.mrb[0].mxu0
    %v2584 = vpop.f32.mrb[0].mxu0
    %v2585 = vadd.f32 0.0, %v2584
    %v2586 = vpop.f32.mrb[0].mxu0
    %2587 = vmatprep.mubr.bf16.mxu0 0
    %2588 = vmatmul.mubr.bf16.gmra.mrb[0].mxu0 %v2512
    %v2589 = vpop.f32.mrb[0].mxu0
    %v2590 = vadd.f32 0.0, %v2589
    %v2591 = vpop.f32.mrb[0].mxu0
    %v2592 = vpop.f32.mrb[0].mxu0
    %v2593 = vadd.f32 0.0, %v2592
    %v2594 = vpop.f32.mrb[0].mxu0
    %2595 = vmatprep.mubr.bf16.mxu0 0
    %2596 = vmatmul.mubr.bf16.gmra.mrb[0].mxu0 %v2515
    %v2597 = vpop.f32.mrb[0].mxu0
    %v2598 = vadd.f32 0.0, %v2597
    %v2599 = vpop.f32.mrb[0].mxu0
    %v2600 = vpop.f32.mrb[0].mxu0
    %v2601 = vadd.f32 0.0, %v2600
    %v2602 = vpop.f32.mrb[0].mxu0
    %2603 = vmatprep.mubr.bf16.mxu0 0
    %2604 = vmatmul.mubr.bf16.gmra.mrb[0].mxu0 %v2518
    %v2605 = vpop.f32.mrb[0].mxu0
    %v2606 = vadd.f32 0.0, %v2605
    %v2607 = vpop.f32.mrb[0].mxu0
    %v2608 = vpop.f32.mrb[0].mxu0
    %v2609 = vadd.f32 0.0, %v2608
    %v2610 = vpop.f32.mrb[0].mxu0
    %2611 = vmatprep.mubr.bf16.mxu0 0
    %2612 = vmatmul.mubr.bf16.gmra.mrb[0].mxu0 %v2521
    %v2613 = vpop.f32.mrb[0].mxu0
    %v2614 = vadd.f32 0.0, %v2613
    %v2615 = vpop.f32.mrb[0].mxu0
    %v2616 = vpop.f32.mrb[0].mxu0
    %v2617 = vadd.f32 0.0, %v2616
    %v2618 = vpop.f32.mrb[0].mxu0
    %2619 = vdwg.mxu0
    %v2620 = vtanh.pop %v2558
    %v2621 = vtanh.pop %v2561
    %v2622 = vtanh.pop %v2566
    %v2623 = vtanh.pop %v2569
    %v2624 = vtanh.pop %v2574
    %v2625 = vtanh.pop %v2577
    %v2626 = vtanh.pop %v2582
    %v2627 = vtanh.pop %v2585
    %v2628 = vtanh.pop %v2590
    %v2629 = vtanh.pop %v2593
    %v2630 = vtanh.pop %v2598
    %v2631 = vtanh.pop %v2601
    %v2632 = vtanh.pop %v2606
    %v2633 = vtanh.pop %v2609
    %v2634 = vtanh.pop %v2614
    %v2635 = vtanh.pop %v2617
    %2636 = vst [vmem:[%s20] sm:$0xff] %v2620
    %2637 = vst [vmem:[%s20 + $0x8] sm:$0xff] %v2621
    %2638 = vst [vmem:[%s20 + $0x10] sm:$0xff] %v2622
    %2639 = vst [vmem:[%s20 + $0x18] sm:$0xff] %v2623
    %2640 = vst [vmem:[%s20 + $0x20] sm:$0xff] %v2624
    %2641 = vst [vmem:[%s20 + $0x28] sm:$0xff] %v2625
    %2642 = vst [vmem:[%s20 + $0x30] sm:$0xff] %v2626
    %2643 = vst [vmem:[%s20 + $0x38] sm:$0xff] %v2627
    %2644 = vst [vmem:[%s20 + $0x40] sm:$0xff] %v2628
    %2645 = vst [vmem:[%s20 + $0x48] sm:$0xff] %v2629
    %2646 = vst [vmem:[%s20 + $0x50] sm:$0xff] %v2630
    %2647 = vst [vmem:[%s20 + $0x58] sm:$0xff] %v2631
    %2648 = vst [vmem:[%s20 + $0x60] sm:$0xff] %v2632
    %2649 = vst [vmem:[%s20 + $0x68] sm:$0xff] %v2633
    %2650 = vst [vmem:[%s20 + $0x70] sm:$0xff] %v2634
    %2651 = vst [vmem:[%s20 + $0x78] sm:$0xff] %v2635
    // Predicated region
    $region114: #{forward.1} parent=1 // pred_check
      _
    $region115: #{forward.1} parent=1 // pred_check_branch
      %2653 = sbr.rel (0) target = $region117
    $region116: #{forward.1} parent=1 // pred_region
      _
    $region117: #{forward.1} parent=1 // pred_fallthru
      _
    // Predicated region
    $region118: #{forward.1} parent=1 // pred_check
      _
    $region119: #{forward.1} parent=1 // pred_check_branch
      %2655 = sbr.rel (0) target = $region121
    $region120: #{forward.1} parent=1 // pred_region
      _
    $region121: #{forward.1} parent=1 // pred_fallthru
      _
    %2656 = vsyncpa [#allocation3], 1
    %2657 = vsyncpa [#allocation5], 1
    %2658 = vsyncpa [#allocation8], 1
    %2659 = vsyncpa [#allocation11], 1
    %2660 = vsyncpa [#allocation14], 1

</llo_original>
